<compile_context>
chip_gen: v6e
topology: v6e:2x2x1
jax: 0.10.0
libtpu: 0.0.40
codegen_flags: <defaults>
</compile_context>

<pallas_src>
import jax
import jax.numpy as jnp
from jax.experimental import pallas as pl
from jax.experimental.pallas import tpu as pltpu

_VMEM_LIMIT = 32 * 1024 * 1024  # safe scoped-VMEM limit on v5e/v6e/v7x


def _round_up(x, m):
    return ((x + m - 1) // m) * m


def _pick_tile(m, unit, cap):
    """Largest multiple of `unit` <= cap that evenly divides round_up(m, unit)."""
    m_pad = _round_up(m, unit)
    best = unit
    t = unit
    while t <= min(cap, m_pad):
        if m_pad % t == 0:
            best = t
        t += unit
    return best, m_pad


# ---------------------------------------------------------------------------
# Kernel 1: conv-as-matmul + bias + PReLU, lane-dense orientation
#   out (N, TILE_M) = W (N, K) @ patches (K, TILE_M); gridded over M tiles.
# ---------------------------------------------------------------------------
def _conv_mm_prelu_kernel(alpha_ref, p_ref, w_ref, b_ref, o_ref):
    y = jnp.dot(w_ref[...], p_ref[...], preferred_element_type=jnp.float32)
    y = y + b_ref[...]                       # (N, 1) broadcast along lanes
    a = alpha_ref[0]
    o_ref[...] = jnp.where(y > 0, y, a * y)  # PReLU in f32


def conv_mm_prelu(patches_km, w_nk, b_n1, alpha, *, tile_cap=1024):
    K, M = patches_km.shape
    N = w_nk.shape[0]
    tile_m, m_pad = _pick_tile(M, 128, tile_cap)
    if m_pad != M:
        patches_km = jnp.pad(patches_km, ((0, 0), (0, m_pad - M)))
    out = pl.pallas_call(
        _conv_mm_prelu_kernel,
        out_shape=jax.ShapeDtypeStruct((N, m_pad), jnp.float32),
        grid=(m_pad // tile_m,),
        in_specs=[
            pl.BlockSpec(memory_space=pltpu.MemorySpace.SMEM),   # PReLU alpha (1,)
            pl.BlockSpec((K, tile_m), lambda i: (0, i)),         # streamed patches
            pl.BlockSpec((N, K), lambda i: (0, 0)),              # resident weight
            pl.BlockSpec((N, 1), lambda i: (0, 0)),              # resident bias
        ],
        out_specs=pl.BlockSpec((N, tile_m), lambda i: (0, i)),   # lane-dense output
        compiler_params=pltpu.CompilerParams(
            dimension_semantics=("parallel",),
            vmem_limit_bytes=_VMEM_LIMIT),
    )(alpha, patches_km, w_nk, b_n1)
    return out if m_pad == M else out[:, :M]


# ---------------------------------------------------------------------------
# Kernel 2: FC MLP (Linear->PReLU->Linear->PReLU->Linear), batch-tiled,
#           weights resident across the batch grid.
# ---------------------------------------------------------------------------
def _fc_mlp_kernel(scal_ref, x_ref, w1_ref, b1_ref, w2_ref, b2_ref,
                   w3_ref, b3_ref, o_ref):
    a1 = scal_ref[0]
    a2 = scal_ref[1]
    h = jnp.dot(x_ref[...], w1_ref[...],
                preferred_element_type=jnp.float32) + b1_ref[...]
    h = jnp.where(h > 0, h, a1 * h)
    h = jnp.dot(h.astype(w2_ref.dtype), w2_ref[...],
                preferred_element_type=jnp.float32) + b2_ref[...]
    h = jnp.where(h > 0, h, a2 * h)
    h = jnp.dot(h.astype(w3_ref.dtype), w3_ref[...],
                preferred_element_type=jnp.float32) + b3_ref[...]
    o_ref[...] = h


def fc_mlp(x, w1, b1, w2, b2, w3, b3, scal, *, tile_cap=128):
    B, D = x.shape
    H1 = w1.shape[1]
    H2 = w2.shape[1]
    N = w3.shape[1]
    tile_b, b_pad = _pick_tile(B, 8, tile_cap)
    if b_pad != B:
        x = jnp.pad(x, ((0, b_pad - B), (0, 0)))
    out = pl.pallas_call(
        _fc_mlp_kernel,
        out_shape=jax.ShapeDtypeStruct((b_pad, N), jnp.float32),
        grid=(b_pad // tile_b,),
        in_specs=[
            pl.BlockSpec(memory_space=pltpu.MemorySpace.SMEM),   # PReLU alphas (2,)
            pl.BlockSpec((tile_b, D), lambda i: (i, 0)),         # streamed batch tile
            pl.BlockSpec((D, H1), lambda i: (0, 0)),
            pl.BlockSpec((1, H1), lambda i: (0, 0)),
            pl.BlockSpec((H1, H2), lambda i: (0, 0)),
            pl.BlockSpec((1, H2), lambda i: (0, 0)),
            pl.BlockSpec((H2, N), lambda i: (0, 0)),
            pl.BlockSpec((1, N), lambda i: (0, 0)),
        ],
        out_specs=pl.BlockSpec((tile_b, N), lambda i: (i, 0)),
        compiler_params=pltpu.CompilerParams(
            dimension_semantics=("parallel",),
            vmem_limit_bytes=_VMEM_LIMIT),
    )(scal, x, w1, b1, w2, b2, w3, b3)
    return out if b_pad == B else out[:B]


# ---------------------------------------------------------------------------
# Kernel 3: BatchNorm1d (training-mode batch stats) + row-wise L2 normalize.
#           Tiny (B, 10) finalize; kept separate so the FC matmuls can tile.
# ---------------------------------------------------------------------------
def _bn_l2_kernel(x_ref, gamma_ref, beta_ref, o_ref):
    h = x_ref[...]
    mu = jnp.mean(h, axis=0, keepdims=True)
    var = jnp.mean((h - mu) ** 2, axis=0, keepdims=True)
    h = (h - mu) * jax.lax.rsqrt(var + 1e-5) * gamma_ref[...] + beta_ref[...]
    sumsq = jnp.sum(h * h, axis=1, keepdims=True)
    o_ref[...] = h * jax.lax.rsqrt(sumsq)    # rsqrt instead of sqrt + divide


def bn_l2(x, gamma, beta):
    vmem = pl.BlockSpec(memory_space=pltpu.MemorySpace.VMEM)
    return pl.pallas_call(
        _bn_l2_kernel,
        out_shape=jax.ShapeDtypeStruct(x.shape, jnp.float32),
        in_specs=[vmem, vmem, vmem],
        out_specs=vmem,
        compiler_params=pltpu.CompilerParams(vmem_limit_bytes=_VMEM_LIMIT),
    )(x, gamma, beta)


# ---------------------------------------------------------------------------
# Plain-JAX glue: im2col / 2x2 max-pool in CBHW layout.
# ---------------------------------------------------------------------------
def im2col_cbhw(x, k):
    # x: (C, B, H, W) -> patches (C*k*k, B*Ho*Wo). K-order is (c, kh, kw), which
    # matches PyTorch conv weight .reshape(C_out, C_in*k*k); M-order is (b, h, w).
    C, B, H, W = x.shape
    Ho, Wo = H - k + 1, W - k + 1
    cols = []
    for dh in range(k):
        for dw in range(k):
            cols.append(x[:, :, dh:dh + Ho, dw:dw + Wo])     # (C, B, Ho, Wo)
    p = jnp.stack(cols, axis=1)                              # (C, k*k, B, Ho, Wo)
    return p.reshape(C * k * k, B * Ho * Wo), (Ho, Wo)


def maxpool2_cbhw(x):
    # TODO(synk): maxpool + im2col remain plain-JAX glue; fusing them into the
    # conv kernel would save an HBM round trip but needs spatially aligned tiles.
    C, B, H, W = x.shape
    return x.reshape(C, B, H // 2, 2, W // 2, 2).max(axis=(3, 5))


# ---------------------------------------------------------------------------
# Parameters (PyTorch layouts; MXU operands pre-cast to bf16).
# ---------------------------------------------------------------------------
def make_params(key):
    ks = jax.random.split(key, 8)
    p = {}
    # Conv weights, PyTorch layout (out, in, kh, kw) -> (out, in*kh*kw).
    cw1 = 0.1 * jax.random.normal(ks[0], (32, 1, 5, 5), jnp.float32)
    cw2 = 0.05 * jax.random.normal(ks[1], (64, 32, 5, 5), jnp.float32)
    p["cw1"] = cw1.reshape(32, 25).astype(jnp.bfloat16)
    p["cb1"] = (0.01 * jax.random.normal(ks[2], (32,), jnp.float32)).reshape(32, 1)
    p["cw2"] = cw2.reshape(64, 800).astype(jnp.bfloat16)
    p["cb2"] = (0.01 * jax.random.normal(ks[3], (64,), jnp.float32)).reshape(64, 1)
    # Linear weights stored as (in, out) = PyTorch (out, in).T.
    p["fw1"] = (0.05 * jax.random.normal(ks[4], (64 * 4 * 4, 256), jnp.float32)).astype(jnp.bfloat16)
    p["fb1"] = jnp.zeros((1, 256), jnp.float32)
    p["fw2"] = (0.05 * jax.random.normal(ks[5], (256, 256), jnp.float32)).astype(jnp.bfloat16)
    p["fb2"] = jnp.zeros((1, 256), jnp.float32)
    p["fw3"] = (0.05 * jax.random.normal(ks[6], (256, 10), jnp.float32)).astype(jnp.bfloat16)
    p["fb3"] = jnp.zeros((1, 10), jnp.float32)
    # BatchNorm1d(10) affine params (PyTorch default: weight=1, bias=0).
    p["gamma"] = jnp.ones((1, 10), jnp.float32)
    p["beta"] = jnp.zeros((1, 10), jnp.float32)
    # PReLU alphas (PyTorch default 0.25, one scalar per PReLU module).
    p["a_conv1"] = jnp.array([0.25], jnp.float32)
    p["a_conv2"] = jnp.array([0.25], jnp.float32)
    p["a_fc"] = jnp.array([0.25, 0.25], jnp.float32)
    return p


# ---------------------------------------------------------------------------
# Forward pass
# ---------------------------------------------------------------------------
@jax.jit
def embedding_net_l2(x_nchw, params):
    x = jnp.transpose(x_nchw, (1, 0, 2, 3)).astype(jnp.float32)   # NCHW -> CBHW
    B = x.shape[1]

    # Conv2d(1, 32, 5) + PReLU as a lane-dense (32, M) im2col matmul.
    patches, (Ho, Wo) = im2col_cbhw(x, 5)                          # (25, B*24*24)
    h = conv_mm_prelu(patches.astype(jnp.bfloat16),
                      params["cw1"], params["cb1"], params["a_conv1"])
    h = maxpool2_cbhw(h.reshape(32, B, Ho, Wo))                    # (32, B, 12, 12)

    # Conv2d(32, 64, 5) + PReLU.
    patches, (Ho, Wo) = im2col_cbhw(h, 5)                          # (800, B*8*8)
    h = conv_mm_prelu(patches.astype(jnp.bfloat16),
                      params["cw2"], params["cb2"], params["a_conv2"])
    h = maxpool2_cbhw(h.reshape(64, B, Ho, Wo))                    # (64, B, 4, 4)

    # Flatten in PyTorch (C, H, W) order, matching .view(B, -1) on NCHW tensors.
    flat = jnp.transpose(h, (1, 0, 2, 3)).reshape(B, 64 * 4 * 4)   # (B, 1024)

    # FC head (Linear/PReLU x2 + Linear), batch-tiled with resident weights.
    logits = fc_mlp(flat.astype(jnp.bfloat16),
                    params["fw1"], params["fb1"], params["fw2"], params["fb2"],
                    params["fw3"], params["fb3"], params["a_fc"])

    # BatchNorm1d (training-mode batch stats) + row-wise L2 normalization.
    return bn_l2(logits, params["gamma"], params["beta"])


if __name__ == "__main__":
    key = jax.random.PRNGKey(0)
    k_x, k_p = jax.random.split(key)
    x = jax.random.normal(k_x, (2, 1, 28, 28), jnp.float32)        # NCHW, like PyTorch
    params = make_params(k_p)

    out = jax.block_until_ready(embedding_net_l2(x, params))

    assert out.shape == (2, 10), out.shape
    norms = jnp.sqrt(jnp.sum(out * out, axis=1))
    assert bool(jnp.all(jnp.abs(norms - 1.0) < 1e-4)), norms
    assert bool(jnp.all(jnp.isfinite(out)))
    print("KERNEL_OK")
</pallas_src>

<mosaic_0001>
module attributes {stable_mosaic.version = 11 : i64} {
  func.func @_conv_mm_prelu_kernel(%arg0: i32, %arg1: memref<1xf32, #tpu.memory_space<smem>>, %arg2: memref<25x384xbf16, #tpu.memory_space<vmem>>, %arg3: memref<32x25xbf16, #tpu.memory_space<vmem>>, %arg4: memref<32x1xf32, #tpu.memory_space<vmem>>, %arg5: memref<32x384xf32, #tpu.memory_space<vmem>>) attributes {dimension_semantics = [#tpu.dimension_semantics<parallel>], iteration_bounds = array<i64: 3>, scalar_prefetch = 0 : i64, scratch_operands = 0 : i64, tpu.core_type = #tpu.core_type<tc>, window_params = [{transform_indices = @transform_0, window_bounds = array<i64: 1>}, {transform_indices = @transform_1, window_bounds = array<i64: 25, 384>}, {pipeline_mode = #tpu.pipeline_mode<synchronous>, transform_indices = @transform_2, window_bounds = array<i64: 32, 25>}, {pipeline_mode = #tpu.pipeline_mode<synchronous>, transform_indices = @transform_3, window_bounds = array<i64: 32, 1>}, {transform_indices = @transform_4, window_bounds = array<i64: 32, 384>}]} {
    %c0 = arith.constant 0 : index
    %c0_0 = arith.constant 0 : index
    %0 = vector.load %arg3[%c0, %c0_0] : memref<32x25xbf16, #tpu.memory_space<vmem>>, vector<32x25xbf16>
    %c0_1 = arith.constant 0 : index
    %c0_2 = arith.constant 0 : index
    %1 = vector.load %arg2[%c0_1, %c0_2] : memref<25x384xbf16, #tpu.memory_space<vmem>>, vector<25x384xbf16>
    %cst = arith.constant dense<0.000000e+00> : vector<32x384xf32>
    %2 = tpu.matmul %0, %1, %cst {dimension_numbers = #tpu.dot_dimension_numbers<[1], [0], [0], [1], [0, 0, 1, 1], [], []>} : vector<32x25xbf16>, vector<25x384xbf16>, vector<32x384xf32> -> vector<32x384xf32>
    %c0_3 = arith.constant 0 : index
    %c0_4 = arith.constant 0 : index
    %3 = vector.load %arg4[%c0_3, %c0_4] : memref<32x1xf32, #tpu.memory_space<vmem>>, vector<32x1xf32>
    %4 = vector.broadcast %3 : vector<32x1xf32> to vector<32x384xf32>
    %5 = arith.addf %2, %4 : vector<32x384xf32>
    %c0_5 = arith.constant 0 : index
    %6 = memref.load %arg1[%c0_5] : memref<1xf32, #tpu.memory_space<smem>>
    %cst_6 = arith.constant 0.000000e+00 : f32
    %7 = vector.broadcast %cst_6 : f32 to vector<32x384xf32>
    %8 = arith.cmpf ogt, %5, %7 : vector<32x384xf32>
    %9 = vector.broadcast %6 : f32 to vector<32x384xf32>
    %10 = arith.mulf %9, %5 : vector<32x384xf32>
    %11 = arith.select %8, %5, %10 : vector<32x384xi1>, vector<32x384xf32>
    %c0_7 = arith.constant 0 : index
    %c0_8 = arith.constant 0 : index
    %12 = vector.load %arg5[%c0_7, %c0_8] : memref<32x384xf32, #tpu.memory_space<vmem>>, vector<32x384xf32>
    tpu.vector_store %arg5[%c0_7, %c0_8], %11 {strides = array<i32>} : memref<32x384xf32, #tpu.memory_space<vmem>>, vector<32x384xf32>,
    return
  }
  func.func @transform_0(%arg0: i32) -> i32 {
    %c0_i32 = arith.constant 0 : i32
    %c0_i32_0 = arith.constant 0 : i32
    return %c0_i32 : i32
  }
  func.func @transform_1(%arg0: i32) -> (i32, i32) {
    %c0_i32 = arith.constant 0 : i32
    %c0_i32_0 = arith.constant 0 : i32
    return %c0_i32, %arg0 : i32, i32
  }
  func.func @transform_2(%arg0: i32) -> (i32, i32) {
    %c0_i32 = arith.constant 0 : i32
    %c0_i32_0 = arith.constant 0 : i32
    %c0_i32_1 = arith.constant 0 : i32
    return %c0_i32, %c0_i32_0 : i32, i32
  }
  func.func @transform_3(%arg0: i32) -> (i32, i32) {
    %c0_i32 = arith.constant 0 : i32
    %c0_i32_0 = arith.constant 0 : i32
    %c0_i32_1 = arith.constant 0 : i32
    return %c0_i32, %c0_i32_0 : i32, i32
  }
  func.func @transform_4(%arg0: i32) -> (i32, i32) {
    %c0_i32 = arith.constant 0 : i32
    %c0_i32_0 = arith.constant 0 : i32
    return %c0_i32, %arg0 : i32, i32
  }
}

module attributes {stable_mosaic.version = 11 : i64} {
  func.func @_conv_mm_prelu_kernel(%arg0: i32, %arg1: memref<1xf32, #tpu.memory_space<smem>>, %arg2: memref<800x128xbf16, #tpu.memory_space<vmem>>, %arg3: memref<64x800xbf16, #tpu.memory_space<vmem>>, %arg4: memref<64x1xf32, #tpu.memory_space<vmem>>, %arg5: memref<64x128xf32, #tpu.memory_space<vmem>>) attributes {dimension_semantics = [#tpu.dimension_semantics<parallel>], iteration_bounds = array<i64: 1>, scalar_prefetch = 0 : i64, scratch_operands = 0 : i64, tpu.core_type = #tpu.core_type<tc>, window_params = [{transform_indices = @transform_0, window_bounds = array<i64: 1>}, {transform_indices = @transform_1, window_bounds = array<i64: 800, 128>}, {pipeline_mode = #tpu.pipeline_mode<synchronous>, transform_indices = @transform_2, window_bounds = array<i64: 64, 800>}, {pipeline_mode = #tpu.pipeline_mode<synchronous>, transform_indices = @transform_3, window_bounds = array<i64: 64, 1>}, {transform_indices = @transform_4, window_bounds = array<i64: 64, 128>}]} {
    %c0 = arith.constant 0 : index
    %c0_0 = arith.constant 0 : index
    %0 = vector.load %arg3[%c0, %c0_0] : memref<64x800xbf16, #tpu.memory_space<vmem>>, vector<64x800xbf16>
    %c0_1 = arith.constant 0 : index
    %c0_2 = arith.constant 0 : index
    %1 = vector.load %arg2[%c0_1, %c0_2] : memref<800x128xbf16, #tpu.memory_space<vmem>>, vector<800x128xbf16>
    %cst = arith.constant dense<0.000000e+00> : vector<64x128xf32>
    %2 = tpu.matmul %0, %1, %cst {dimension_numbers = #tpu.dot_dimension_numbers<[1], [0], [0], [1], [0, 0, 1, 1], [], []>} : vector<64x800xbf16>, vector<800x128xbf16>, vector<64x128xf32> -> vector<64x128xf32>
    %c0_3 = arith.constant 0 : index
    %c0_4 = arith.constant 0 : index
    %3 = vector.load %arg4[%c0_3, %c0_4] : memref<64x1xf32, #tpu.memory_space<vmem>>, vector<64x1xf32>
    %4 = vector.broadcast %3 : vector<64x1xf32> to vector<64x128xf32>
    %5 = arith.addf %2, %4 : vector<64x128xf32>
    %c0_5 = arith.constant 0 : index
    %6 = memref.load %arg1[%c0_5] : memref<1xf32, #tpu.memory_space<smem>>
    %cst_6 = arith.constant 0.000000e+00 : f32
    %7 = vector.broadcast %cst_6 : f32 to vector<64x128xf32>
    %8 = arith.cmpf ogt, %5, %7 : vector<64x128xf32>
    %9 = vector.broadcast %6 : f32 to vector<64x128xf32>
    %10 = arith.mulf %9, %5 : vector<64x128xf32>
    %11 = arith.select %8, %5, %10 : vector<64x128xi1>, vector<64x128xf32>
    %c0_7 = arith.constant 0 : index
    %c0_8 = arith.constant 0 : index
    %12 = vector.load %arg5[%c0_7, %c0_8] : memref<64x128xf32, #tpu.memory_space<vmem>>, vector<64x128xf32>
    tpu.vector_store %arg5[%c0_7, %c0_8], %11 {strides = array<i32>} : memref<64x128xf32, #tpu.memory_space<vmem>>, vector<64x128xf32>,
    return
  }
  func.func @transform_0(%arg0: i32) -> i32 {
    %c0_i32 = arith.constant 0 : i32
    %c0_i32_0 = arith.constant 0 : i32
    return %c0_i32 : i32
  }
  func.func @transform_1(%arg0: i32) -> (i32, i32) {
    %c0_i32 = arith.constant 0 : i32
    %c0_i32_0 = arith.constant 0 : i32
    return %c0_i32, %arg0 : i32, i32
  }
  func.func @transform_2(%arg0: i32) -> (i32, i32) {
    %c0_i32 = arith.constant 0 : i32
    %c0_i32_0 = arith.constant 0 : i32
    %c0_i32_1 = arith.constant 0 : i32
    return %c0_i32, %c0_i32_0 : i32, i32
  }
  func.func @transform_3(%arg0: i32) -> (i32, i32) {
    %c0_i32 = arith.constant 0 : i32
    %c0_i32_0 = arith.constant 0 : i32
    %c0_i32_1 = arith.constant 0 : i32
    return %c0_i32, %c0_i32_0 : i32, i32
  }
  func.func @transform_4(%arg0: i32) -> (i32, i32) {
    %c0_i32 = arith.constant 0 : i32
    %c0_i32_0 = arith.constant 0 : i32
    return %c0_i32, %arg0 : i32, i32
  }
}

module attributes {stable_mosaic.version = 11 : i64} {
  func.func @_fc_mlp_kernel(%arg0: i32, %arg1: memref<2xf32, #tpu.memory_space<smem>>, %arg2: memref<8x1024xbf16, #tpu.memory_space<vmem>>, %arg3: memref<1024x256xbf16, #tpu.memory_space<vmem>>, %arg4: memref<1x256xf32, #tpu.memory_space<vmem>>, %arg5: memref<256x256xbf16, #tpu.memory_space<vmem>>, %arg6: memref<1x256xf32, #tpu.memory_space<vmem>>, %arg7: memref<256x10xbf16, #tpu.memory_space<vmem>>, %arg8: memref<1x10xf32, #tpu.memory_space<vmem>>, %arg9: memref<8x10xf32, #tpu.memory_space<vmem>>) attributes {dimension_semantics = [#tpu.dimension_semantics<parallel>], iteration_bounds = array<i64: 1>, scalar_prefetch = 0 : i64, scratch_operands = 0 : i64, tpu.core_type = #tpu.core_type<tc>, window_params = [{transform_indices = @transform_0, window_bounds = array<i64: 2>}, {transform_indices = @transform_1, window_bounds = array<i64: 8, 1024>}, {pipeline_mode = #tpu.pipeline_mode<synchronous>, transform_indices = @transform_2, window_bounds = array<i64: 1024, 256>}, {pipeline_mode = #tpu.pipeline_mode<synchronous>, transform_indices = @transform_3, window_bounds = array<i64: 1, 256>}, {pipeline_mode = #tpu.pipeline_mode<synchronous>, transform_indices = @transform_4, window_bounds = array<i64: 256, 256>}, {pipeline_mode = #tpu.pipeline_mode<synchronous>, transform_indices = @transform_5, window_bounds = array<i64: 1, 256>}, {pipeline_mode = #tpu.pipeline_mode<synchronous>, transform_indices = @transform_6, window_bounds = array<i64: 256, 10>}, {pipeline_mode = #tpu.pipeline_mode<synchronous>, transform_indices = @transform_7, window_bounds = array<i64: 1, 10>}, {transform_indices = @transform_8, window_bounds = array<i64: 8, 10>}]} {
    %c0 = arith.constant 0 : index
    %0 = memref.load %arg1[%c0] : memref<2xf32, #tpu.memory_space<smem>>
    %c1 = arith.constant 1 : index
    %1 = memref.load %arg1[%c1] : memref<2xf32, #tpu.memory_space<smem>>
    %c0_0 = arith.constant 0 : index
    %c0_1 = arith.constant 0 : index
    %2 = vector.load %arg2[%c0_0, %c0_1] : memref<8x1024xbf16, #tpu.memory_space<vmem>>, vector<8x1024xbf16>
    %c0_2 = arith.constant 0 : index
    %c0_3 = arith.constant 0 : index
    %3 = vector.load %arg3[%c0_2, %c0_3] : memref<1024x256xbf16, #tpu.memory_space<vmem>>, vector<1024x256xbf16>
    %cst = arith.constant dense<0.000000e+00> : vector<8x256xf32>
    %4 = tpu.matmul %2, %3, %cst {dimension_numbers = #tpu.dot_dimension_numbers<[1], [0], [0], [1], [0, 0, 1, 1], [], []>} : vector<8x1024xbf16>, vector<1024x256xbf16>, vector<8x256xf32> -> vector<8x256xf32>
    %c0_4 = arith.constant 0 : index
    %c0_5 = arith.constant 0 : index
    %5 = vector.load %arg4[%c0_4, %c0_5] : memref<1x256xf32, #tpu.memory_space<vmem>>, vector<1x256xf32>
    %6 = vector.broadcast %5 : vector<1x256xf32> to vector<8x256xf32>
    %7 = arith.addf %4, %6 : vector<8x256xf32>
    %cst_6 = arith.constant 0.000000e+00 : f32
    %8 = vector.broadcast %cst_6 : f32 to vector<8x256xf32>
    %9 = arith.cmpf ogt, %7, %8 : vector<8x256xf32>
    %10 = vector.broadcast %0 : f32 to vector<8x256xf32>
    %11 = arith.mulf %10, %7 : vector<8x256xf32>
    %12 = arith.select %9, %7, %11 : vector<8x256xi1>, vector<8x256xf32>
    %13 = arith.truncf %12 : vector<8x256xf32> to vector<8x256xbf16>
    %c0_7 = arith.constant 0 : index
    %c0_8 = arith.constant 0 : index
    %14 = vector.load %arg5[%c0_7, %c0_8] : memref<256x256xbf16, #tpu.memory_space<vmem>>, vector<256x256xbf16>
    %cst_9 = arith.constant dense<0.000000e+00> : vector<8x256xf32>
    %15 = tpu.matmul %13, %14, %cst_9 {dimension_numbers = #tpu.dot_dimension_numbers<[1], [0], [0], [1], [0, 0, 1, 1], [], []>} : vector<8x256xbf16>, vector<256x256xbf16>, vector<8x256xf32> -> vector<8x256xf32>
    %c0_10 = arith.constant 0 : index
    %c0_11 = arith.constant 0 : index
    %16 = vector.load %arg6[%c0_10, %c0_11] : memref<1x256xf32, #tpu.memory_space<vmem>>, vector<1x256xf32>
    %17 = vector.broadcast %16 : vector<1x256xf32> to vector<8x256xf32>
    %18 = arith.addf %15, %17 : vector<8x256xf32>
    %cst_12 = arith.constant 0.000000e+00 : f32
    %19 = vector.broadcast %cst_12 : f32 to vector<8x256xf32>
    %20 = arith.cmpf ogt, %18, %19 : vector<8x256xf32>
    %21 = vector.broadcast %1 : f32 to vector<8x256xf32>
    %22 = arith.mulf %21, %18 : vector<8x256xf32>
    %23 = arith.select %20, %18, %22 : vector<8x256xi1>, vector<8x256xf32>
    %24 = arith.truncf %23 : vector<8x256xf32> to vector<8x256xbf16>
    %c0_13 = arith.constant 0 : index
    %c0_14 = arith.constant 0 : index
    %25 = vector.load %arg7[%c0_13, %c0_14] : memref<256x10xbf16, #tpu.memory_space<vmem>>, vector<256x10xbf16>
    %cst_15 = arith.constant dense<0.000000e+00> : vector<8x10xf32>
    %26 = tpu.matmul %24, %25, %cst_15 {dimension_numbers = #tpu.dot_dimension_numbers<[1], [0], [0], [1], [0, 0, 1, 1], [], []>} : vector<8x256xbf16>, vector<256x10xbf16>, vector<8x10xf32> -> vector<8x10xf32>
    %c0_16 = arith.constant 0 : index
    %c0_17 = arith.constant 0 : index
    %27 = vector.load %arg8[%c0_16, %c0_17] : memref<1x10xf32, #tpu.memory_space<vmem>>, vector<1x10xf32>
    %28 = vector.broadcast %27 : vector<1x10xf32> to vector<8x10xf32>
    %29 = arith.addf %26, %28 : vector<8x10xf32>
    %c0_18 = arith.constant 0 : index
    %c0_19 = arith.constant 0 : index
    %30 = vector.load %arg9[%c0_18, %c0_19] : memref<8x10xf32, #tpu.memory_space<vmem>>, vector<8x10xf32>
    tpu.vector_store %arg9[%c0_18, %c0_19], %29 {strides = array<i32>} : memref<8x10xf32, #tpu.memory_space<vmem>>, vector<8x10xf32>,
    return
  }
  func.func @transform_0(%arg0: i32) -> i32 {
    %c0_i32 = arith.constant 0 : i32
    %c0_i32_0 = arith.constant 0 : i32
    return %c0_i32 : i32
  }
  func.func @transform_1(%arg0: i32) -> (i32, i32) {
    %c0_i32 = arith.constant 0 : i32
    %c0_i32_0 = arith.constant 0 : i32
    return %arg0, %c0_i32 : i32, i32
  }
  func.func @transform_2(%arg0: i32) -> (i32, i32) {
    %c0_i32 = arith.constant 0 : i32
    %c0_i32_0 = arith.constant 0 : i32
    %c0_i32_1 = arith.constant 0 : i32
    return %c0_i32, %c0_i32_0 : i32, i32
  }
  func.func @transform_3(%arg0: i32) -> (i32, i32) {
    %c0_i32 = arith.constant 0 : i32
    %c0_i32_0 = arith.constant 0 : i32
    %c0_i32_1 = arith.constant 0 : i32
    return %c0_i32, %c0_i32_0 : i32, i32
  }
  func.func @transform_4(%arg0: i32) -> (i32, i32) {
    %c0_i32 = arith.constant 0 : i32
    %c0_i32_0 = arith.constant 0 : i32
    %c0_i32_1 = arith.constant 0 : i32
    return %c0_i32, %c0_i32_0 : i32, i32
  }
  func.func @transform_5(%arg0: i32) -> (i32, i32) {
    %c0_i32 = arith.constant 0 : i32
    %c0_i32_0 = arith.constant 0 : i32
    %c0_i32_1 = arith.constant 0 : i32
    return %c0_i32, %c0_i32_0 : i32, i32
  }
  func.func @transform_6(%arg0: i32) -> (i32, i32) {
    %c0_i32 = arith.constant 0 : i32
    %c0_i32_0 = arith.constant 0 : i32
    %c0_i32_1 = arith.constant 0 : i32
    return %c0_i32, %c0_i32_0 : i32, i32
  }
  func.func @transform_7(%arg0: i32) -> (i32, i32) {
    %c0_i32 = arith.constant 0 : i32
    %c0_i32_0 = arith.constant 0 : i32
    %c0_i32_1 = arith.constant 0 : i32
    return %c0_i32, %c0_i32_0 : i32, i32
  }
  func.func @transform_8(%arg0: i32) -> (i32, i32) {
    %c0_i32 = arith.constant 0 : i32
    %c0_i32_0 = arith.constant 0 : i32
    return %arg0, %c0_i32 : i32, i32
  }
}

module attributes {stable_mosaic.version = 11 : i64} {
  func.func @_bn_l2_kernel(%arg0: memref<2x10xf32, #tpu.memory_space<vmem>>, %arg1: memref<1x10xf32, #tpu.memory_space<vmem>>, %arg2: memref<1x10xf32, #tpu.memory_space<vmem>>, %arg3: memref<2x10xf32, #tpu.memory_space<vmem>>) attributes {dimension_semantics = [], scalar_prefetch = 0 : i64, scratch_operands = 0 : i64, tpu.core_type = #tpu.core_type<tc>} {
    %c0 = arith.constant 0 : index
    %c0_0 = arith.constant 0 : index
    %0 = vector.load %arg0[%c0, %c0_0] : memref<2x10xf32, #tpu.memory_space<vmem>>, vector<2x10xf32>
    %cst = arith.constant dense<0.000000e+00> : vector<10xf32>
    %1 = vector.multi_reduction <add>, %0, %cst [0] : vector<2x10xf32> to vector<10xf32>
    %2 = vector.shape_cast %1 : vector<10xf32> to vector<1x10xf32>
    %cst_1 = arith.constant 2.000000e+00 : f32
    %3 = vector.broadcast %cst_1 : f32 to vector<1x10xf32>
    %4 = arith.divf %2, %3 : vector<1x10xf32>
    %5 = vector.broadcast %4 : vector<1x10xf32> to vector<2x10xf32>
    %6 = arith.subf %0, %5 : vector<2x10xf32>
    %7 = arith.mulf %6, %6 : vector<2x10xf32>
    %cst_2 = arith.constant dense<0.000000e+00> : vector<10xf32>
    %8 = vector.multi_reduction <add>, %7, %cst_2 [0] : vector<2x10xf32> to vector<10xf32>
    %9 = vector.shape_cast %8 : vector<10xf32> to vector<1x10xf32>
    %cst_3 = arith.constant 2.000000e+00 : f32
    %10 = vector.broadcast %cst_3 : f32 to vector<1x10xf32>
    %11 = arith.divf %9, %10 : vector<1x10xf32>
    %12 = vector.broadcast %4 : vector<1x10xf32> to vector<2x10xf32>
    %13 = arith.subf %0, %12 : vector<2x10xf32>
    %cst_4 = arith.constant 9.99999974E-6 : f32
    %14 = vector.broadcast %cst_4 : f32 to vector<1x10xf32>
    %15 = arith.addf %11, %14 : vector<1x10xf32>
    %16 = math.rsqrt %15 : vector<1x10xf32>
    %17 = vector.broadcast %16 : vector<1x10xf32> to vector<2x10xf32>
    %18 = arith.mulf %13, %17 : vector<2x10xf32>
    %c0_5 = arith.constant 0 : index
    %c0_6 = arith.constant 0 : index
    %19 = vector.load %arg1[%c0_5, %c0_6] : memref<1x10xf32, #tpu.memory_space<vmem>>, vector<1x10xf32>
    %20 = vector.broadcast %19 : vector<1x10xf32> to vector<2x10xf32>
    %21 = arith.mulf %18, %20 : vector<2x10xf32>
    %c0_7 = arith.constant 0 : index
    %c0_8 = arith.constant 0 : index
    %22 = vector.load %arg2[%c0_7, %c0_8] : memref<1x10xf32, #tpu.memory_space<vmem>>, vector<1x10xf32>
    %23 = vector.broadcast %22 : vector<1x10xf32> to vector<2x10xf32>
    %24 = arith.addf %21, %23 : vector<2x10xf32>
    %25 = arith.mulf %24, %24 : vector<2x10xf32>
    %cst_9 = arith.constant dense<0.000000e+00> : vector<2xf32>
    %26 = vector.multi_reduction <add>, %25, %cst_9 [1] : vector<2x10xf32> to vector<2xf32>
    %27 = vector.shape_cast %26 : vector<2xf32> to vector<2x1xf32>
    %28 = math.rsqrt %27 : vector<2x1xf32>
    %29 = vector.broadcast %28 : vector<2x1xf32> to vector<2x10xf32>
    %30 = arith.mulf %24, %29 : vector<2x10xf32>
    %c0_10 = arith.constant 0 : index
    %c0_11 = arith.constant 0 : index
    %31 = vector.load %arg3[%c0_10, %c0_11] : memref<2x10xf32, #tpu.memory_space<vmem>>, vector<2x10xf32>
    tpu.vector_store %arg3[%c0_10, %c0_11], %30 {strides = array<i32>} : memref<2x10xf32, #tpu.memory_space<vmem>>, vector<2x10xf32>,
    return
  }
}

</mosaic_0001>

<llo_original>
// kernel: embedding_net_l2.4
$region0: #{embedding_net_l2.4}
  #allocation0 [shape = 'u32[]', space=smem, size = 0x4, offset = 0x4, fixed_abs, tag = 'smem constant byte address 0x4 - core index']
  #allocation1 [shape = 'u32[144,128]{1,0:T(1,128)}', space=vmem, size = 0x12000, scoped, tag = 'internal scratch']
  #allocation2 [shape = 'f32[1]{0:T(128)S(6)}', space=smem, size = 0x200, scoped, tag = 'scoped memory for embedding_net_l2.4']
  %s0 = inlined_call_operand.<no memory space> [shape: f32[1], index: 0, kind: input, shape index: {}]
  %s1 = inlined_call_operand.vmem [shape: bf16[25,1152], index: 1, kind: input, shape index: {}]
  %s2 = inlined_call_operand.vmem [shape: bf16[32,25], index: 2, kind: input, shape index: {}]
  %s3 = inlined_call_operand.vmem [shape: f32[32,1], index: 3, kind: input, shape index: {}]
  %s4 = inlined_call_operand.vmem [shape: f32[32,1152], index: 4, kind: output, shape index: {}]
  %s5 = sld [smem:[#allocation0]]
  $region94: #{embedding_net_l2.4} parent=0
    _
  %s7 = ssub.s32 1, %s5
  %s8 = scalar_select 0, %s7, %s5
  %9 = sst [smem:[#allocation2]] %s0
  $region1: #{embedding_net_l2.4} parent=0
    #allocation3 [shape = 'u8[49152]{0}', space=vmem, size = 0xc000, scoped, tag = 'input window, operand 1']
    #allocation4 [shape = 'u8[98304]{0}', space=vmem, size = 0x18000, scoped, tag = 'output window, operand 0']
    loop: start=0, step=1, limit=5
    $region2: #{embedding_net_l2.4} parent=1 // loop_pre_header
      _
    $region3: #{embedding_net_l2.4} parent=1 // loop_header
      %s11 = sphi 0, %s15
      %p12 = scmp.ge.s32.totalorder %s11, 5
      %s19 = sphi 0, %s19
      %s21 = sphi 0, %s19
      %s22 = sphi 0, %s21
      %s36 = sphi 0, %s22
      %s42 = sphi 0, %s44
      %s45 = sphi 0, %s42
      %s46 = sphi 0, %s45
      %s62 = sphi 0, %s46
      %s66 = sphi 0, %s66
      %s68 = sphi 0, %s66
      %s69 = sphi 0, %s68
      %s83 = sphi 0, %s69
      %s87 = sphi 0, %s87
      %s89 = sphi 0, %s87
      %s90 = sphi 0, %s89
      %s104 = sphi 0, %s90
      %s110 = sphi 0, %s112
      %s113 = sphi 0, %s110
      %s114 = sphi 0, %s113
      %s130 = sphi 0, %s114
    $region4: #{embedding_net_l2.4} parent=1 // loop_header_branch
      %14 = sbr.rel (%p12) target = $region8
    $region5: #{embedding_net_l2.4} parent=1 // loop_body
      %s16 = ssub.s32 %s11, 1
      %s17 = ssub.s32 %s11, 2
      %s18 = sadd.s32 %s11, 1
      %s20 = sadd.s32 %s19, 1
      %p23 = scmp.eq.s32.totalorder %s11, 2
      %p24 = scmp.ne.s32.totalorder %s19, %s21
      %p25 = scmp.eq.s32.totalorder %s11, 0
      %p26 = por %p24, %p25
      %p27 = scmp.ne.s32.totalorder %s19, %s21
      %p28 = scmp.eq.s32.totalorder %s16, 2
      %p29 = por %p27, %p28
      %p30 = scmp.ne.s32.totalorder %s21, %s22
      %p31 = scmp.eq.s32.totalorder %s16, 0
      %p32 = por %p30, %p31
      %p33 = scmp.ne.s32.totalorder %s21, %s22
      %p34 = scmp.eq.s32.totalorder %s17, 2
      %p35 = por %p33, %p34
      %p37 = scmp.ne.s32.totalorder %s22, %s36
      %p38 = scmp.eq.s32.totalorder %s17, 0
      %p39 = por %p37, %p38
      %s40 = ssub.s32 %s11, %s18
      %p41 = scmp.eq.s32.totalorder %s40, 0
      %s43 = sadd.s32 %s42, 1
      %s44 = scalar_select %p41, %s42, %s43
      %p47 = pneg %p41
      %p48 = scmp.eq.s32.totalorder %s11, 2
      %p49 = por %p47, %p48
      %p50 = scmp.ne.s32.totalorder %s42, %s45
      %p51 = scmp.eq.s32.totalorder %s11, 0
      %p52 = por %p50, %p51
      %p53 = scmp.ne.s32.totalorder %s42, %s45
      %p54 = scmp.eq.s32.totalorder %s16, 2
      %p55 = por %p53, %p54
      %p56 = scmp.ne.s32.totalorder %s45, %s46
      %p57 = scmp.eq.s32.totalorder %s16, 0
      %p58 = por %p56, %p57
      %p59 = scmp.ne.s32.totalorder %s45, %s46
      %p60 = scmp.eq.s32.totalorder %s17, 2
      %p61 = por %p59, %p60
      %p63 = scmp.ne.s32.totalorder %s46, %s62
      %p64 = scmp.eq.s32.totalorder %s17, 0
      %p65 = por %p63, %p64
      %s67 = sadd.s32 %s66, 1
      %p70 = scmp.eq.s32.totalorder %s11, 2
      %p71 = scmp.ne.s32.totalorder %s66, %s68
      %p72 = scmp.eq.s32.totalorder %s11, 0
      %p73 = por %p71, %p72
      %p74 = scmp.ne.s32.totalorder %s66, %s68
      %p75 = scmp.eq.s32.totalorder %s16, 2
      %p76 = por %p74, %p75
      %p77 = scmp.ne.s32.totalorder %s68, %s69
      %p78 = scmp.eq.s32.totalorder %s16, 0
      %p79 = por %p77, %p78
      %p80 = scmp.ne.s32.totalorder %s68, %s69
      %p81 = scmp.eq.s32.totalorder %s17, 2
      %p82 = por %p80, %p81
      %p84 = scmp.ne.s32.totalorder %s69, %s83
      %p85 = scmp.eq.s32.totalorder %s17, 0
      %p86 = por %p84, %p85
      %s88 = sadd.s32 %s87, 1
      %p91 = scmp.eq.s32.totalorder %s11, 2
      %p92 = scmp.ne.s32.totalorder %s87, %s89
      %p93 = scmp.eq.s32.totalorder %s11, 0
      %p94 = por %p92, %p93
      %p95 = scmp.ne.s32.totalorder %s87, %s89
      %p96 = scmp.eq.s32.totalorder %s16, 2
      %p97 = por %p95, %p96
      %p98 = scmp.ne.s32.totalorder %s89, %s90
      %p99 = scmp.eq.s32.totalorder %s16, 0
      %p100 = por %p98, %p99
      %p101 = scmp.ne.s32.totalorder %s89, %s90
      %p102 = scmp.eq.s32.totalorder %s17, 2
      %p103 = por %p101, %p102
      %p105 = scmp.ne.s32.totalorder %s90, %s104
      %p106 = scmp.eq.s32.totalorder %s17, 0
      %p107 = por %p105, %p106
      %s108 = ssub.s32 %s11, %s18
      %p109 = scmp.eq.s32.totalorder %s108, 0
      %s111 = sadd.s32 %s110, 1
      %s112 = scalar_select %p109, %s110, %s111
      %p115 = pneg %p109
      %p116 = scmp.eq.s32.totalorder %s11, 2
      %p117 = por %p115, %p116
      %p118 = scmp.ne.s32.totalorder %s110, %s113
      %p119 = scmp.eq.s32.totalorder %s11, 0
      %p120 = por %p118, %p119
      %p121 = scmp.ne.s32.totalorder %s110, %s113
      %p122 = scmp.eq.s32.totalorder %s16, 2
      %p123 = por %p121, %p122
      %p124 = scmp.ne.s32.totalorder %s113, %s114
      %p125 = scmp.eq.s32.totalorder %s16, 0
      %p126 = por %p124, %p125
      %p127 = scmp.ne.s32.totalorder %s113, %s114
      %p128 = scmp.eq.s32.totalorder %s17, 2
      %p129 = por %p127, %p128
      %p131 = scmp.ne.s32.totalorder %s114, %s130
      %p132 = scmp.eq.s32.totalorder %s17, 0
      %p133 = por %p131, %p132
      %p134 = scmp.le.s32.totalorder 1, %s11
      %p135 = scmp.lt.s32.totalorder %s11, 4
      %p136 = pnand %p134, %p135
      %p137 = pneg %p136
      // Predicated region
      $region9: #{embedding_net_l2.4} parent=5 // pred_check
        _
      $region10: #{embedding_net_l2.4} parent=5 // pred_check_branch
        %139 = sbr.rel (%p136) target = $region12
      $region11: #{embedding_net_l2.4} parent=5 // pred_region
        %s140 = ssub.s32 %s11, 1
        // Predicated region
        $region13: #{embedding_net_l2.4} parent=11 // pred_check
          %p141 = pneg %p32
        $region14: #{embedding_net_l2.4} parent=11 // pred_check_branch
          %143 = sbr.rel (%p141) target = $region16
        $region15: #{embedding_net_l2.4} parent=11 // pred_region
          _
        $region16: #{embedding_net_l2.4} parent=11 // pred_fallthru
          _
        // Predicated region
        $region17: #{embedding_net_l2.4} parent=11 // pred_check
          %p144 = pneg %p79
        $region18: #{embedding_net_l2.4} parent=11 // pred_check_branch
          %146 = sbr.rel (%p144) target = $region20
        $region19: #{embedding_net_l2.4} parent=11 // pred_region
          _
        $region20: #{embedding_net_l2.4} parent=11 // pred_fallthru
          _
        // Predicated region
        $region21: #{embedding_net_l2.4} parent=11 // pred_check
          %p147 = pneg %p100
        $region22: #{embedding_net_l2.4} parent=11 // pred_check_branch
          %149 = sbr.rel (%p147) target = $region24
        $region23: #{embedding_net_l2.4} parent=11 // pred_region
          _
        $region24: #{embedding_net_l2.4} parent=11 // pred_fallthru
          _
      $region12: #{embedding_net_l2.4} parent=5 // pred_fallthru
        _
      %p150 = scmp.lt.s32.totalorder %s11, 3
      // Predicated region
      $region25: #{embedding_net_l2.4} parent=5 // pred_check
        %p151 = pneg %p150
      $region26: #{embedding_net_l2.4} parent=5 // pred_check_branch
        %153 = sbr.rel (%p151) target = $region28
      $region27: #{embedding_net_l2.4} parent=5 // pred_region
        // Predicated region
        $region29: #{embedding_net_l2.4} parent=27 // pred_check
          %p154 = pneg %p52
        $region30: #{embedding_net_l2.4} parent=27 // pred_check_branch
          %156 = sbr.rel (%p154) target = $region32
        $region31: #{embedding_net_l2.4} parent=27 // pred_region
          %s157 = sand.u32 %s42, 1
          %s158 = sand.u32 %s42, 1
          %s159 = smul.addr %s158, 48
          %s160 = scalar_lea.vmem [#allocation3], %s159
          %s161 = smul.u32 3, %s11
          %s162 = smul.addr %s161, 4
          %s163 = scalar_lea.vmem %s1, %s162
          // Predicated region
          $region33: #{embedding_net_l2.4} parent=31 // pred_check
            _
          $region34: #{embedding_net_l2.4} parent=31 // pred_check_branch
            %165 = sbr.rel (0) target = $region36
          $region35: #{embedding_net_l2.4} parent=31 // pred_region
            // Predicated region
            $region37: #{embedding_net_l2.4} parent=35 // pred_check
              _
            $region38: #{embedding_net_l2.4} parent=35 // pred_check_branch
              %167 = sbr.rel (0) target = $region40
            $region39: #{embedding_net_l2.4} parent=35 // pred_region
              %s168 = scalar_lea.vmem %s163, 8
              %s169 = scalar_lea.vmem %s160, 8 [#allocation3]
              loop: start=0, step=1, limit=1
              $region41: #{embedding_net_l2.4} parent=39 // loop_pre_header
                _
              $region42: #{embedding_net_l2.4} parent=39 // loop_header
                %s171 = sphi 0, %s175
                %p172 = scmp.ge.s32.totalorder %s171, 1
                %s176 = sphi %s163, %s163
                %s177 = sphi %s160, %s160
              $region43: #{embedding_net_l2.4} parent=39 // loop_header_branch
                %174 = sbr.rel (%p172) target = $region47
              $region44: #{embedding_net_l2.4} parent=39 // loop_body
                %v178 = vld [vmem:[%s176] sm:$0xff]
                %179 = vst [vmem:[%s177] sm:$0xff] %v178
                %v180 = vld [vmem:[%s176 + $0x24] sm:$0xff]
                %181 = vst [vmem:[%s177 + $0xc] sm:$0xff] %v180
                %v182 = vld [vmem:[%s176 + $0x48] sm:$0xff]
                %183 = vst [vmem:[%s177 + $0x18] sm:$0xff] %v182
                %v184 = vld [vmem:[%s176 + $0x6c] sm:$0xff]
                %185 = vst [vmem:[%s177 + $0x24] sm:$0xff] %v184
              $region45: #{embedding_net_l2.4} parent=39 // loop_footer
                %s175 = sadd.s32 1, %s171
              $region46: #{embedding_net_l2.4} parent=39 // loop_footer_branch
                %170 = sbr.rel target = $region42
              $region47: #{embedding_net_l2.4} parent=39 // loop_exit
                _
              %s187 = ssub.s32 16, 1
              loop: start=0, step=1, limit=1
              $region48: #{embedding_net_l2.4} parent=39 // loop_pre_header
                _
              $region49: #{embedding_net_l2.4} parent=39 // loop_header
                %s189 = sphi 0, %s193
                %p190 = scmp.ge.s32.totalorder %s189, 1
                %s194 = sphi %s168, %s168
                %s195 = sphi %s169, %s169
              $region50: #{embedding_net_l2.4} parent=39 // loop_header_branch
                %192 = sbr.rel (%p190) target = $region54
              $region51: #{embedding_net_l2.4} parent=39 // loop_body
                %v196 = vld [vmem:[%s194] sm:%s187]
                %197 = vst [vmem:[%s195] sm:%s187] %v196
                %v198 = vld [vmem:[%s194 + $0x24] sm:%s187]
                %199 = vst [vmem:[%s195 + $0xc] sm:%s187] %v198
                %v200 = vld [vmem:[%s194 + $0x48] sm:%s187]
                %201 = vst [vmem:[%s195 + $0x18] sm:%s187] %v200
                %v202 = vld [vmem:[%s194 + $0x6c] sm:%s187]
                %203 = vst [vmem:[%s195 + $0x24] sm:%s187] %v202
              $region52: #{embedding_net_l2.4} parent=39 // loop_footer
                %s193 = sadd.s32 1, %s189
              $region53: #{embedding_net_l2.4} parent=39 // loop_footer_branch
                %188 = sbr.rel target = $region49
              $region54: #{embedding_net_l2.4} parent=39 // loop_exit
                _
            $region40: #{embedding_net_l2.4} parent=35 // pred_fallthru
              _
          $region36: #{embedding_net_l2.4} parent=31 // pred_fallthru
            _
          %204 = vnop
        $region32: #{embedding_net_l2.4} parent=27 // pred_fallthru
          _
      $region28: #{embedding_net_l2.4} parent=5 // pred_fallthru
        _
      %p205 = scmp.le.s32.totalorder 1, %s11
      %p206 = scmp.lt.s32.totalorder %s11, 4
      %p207 = pnand %p205, %p206
      %p208 = pneg %p207
      // Predicated region
      $region55: #{embedding_net_l2.4} parent=5 // pred_check
        _
      $region56: #{embedding_net_l2.4} parent=5 // pred_check_branch
        %210 = sbr.rel (%p207) target = $region58
      $region57: #{embedding_net_l2.4} parent=5 // pred_region
        %s211 = ssub.s32 %s11, 1
        %s212 = sand.u32 %s45, 1
        %s213 = sand.u32 %s45, 1
        %s214 = smul.addr %s213, 48
        %s215 = scalar_lea.vmem [#allocation3], %s214
        // Predicated region
        $region59: #{embedding_net_l2.4} parent=57 // pred_check
          %p216 = pneg %p58
        $region60: #{embedding_net_l2.4} parent=57 // pred_check_branch
          %218 = sbr.rel (%p216) target = $region62
        $region61: #{embedding_net_l2.4} parent=57 // pred_region
          _
        $region62: #{embedding_net_l2.4} parent=57 // pred_fallthru
          _
        %p219 = pneg %p32
        %p220 = pneg %p29
        %s221 = sand.u32 %s45, 1
        %s222 = sand.u32 %s45, 1
        %s223 = smul.addr %s222, 48
        %s224 = scalar_lea.vmem [#allocation3], %s223
        %p225 = pneg %p58
        %p226 = pneg %p55
        %p227 = pneg %p79
        %p228 = pneg %p76
        %p229 = pneg %p100
        %p230 = pneg %p97
        %p231 = pneg %p126
        %p232 = pneg %p123
        %s233 = sand.u32 %s113, 1
        %s234 = sand.u32 %s113, 1
        %s235 = smul.addr %s234, 96
        %s236 = scalar_lea.vmem [#allocation4], %s235
        %s237 = smul.u32 3, %s16
        %s238 = smul.u32 3, %s16
        %v240 = vld [vmem:[%s2] sm:$0xf]
        %v241 = vld [vmem:[%s2 + $0x4] sm:$0xf]
        %v242 = vld [vmem:[%s2 + $0x8] sm:$0xf]
        %v243 = vld [vmem:[%s2 + $0xc] sm:$0xf]
        %v244 = vld [vmem:[%s215] sm:$0xff]
        %v245 = vld [vmem:[%s215 + $0x8] sm:$0xf]
        %v246 = vld [vmem:[%s215 + $0xc] sm:$0xff]
        %v247 = vld [vmem:[%s215 + $0x14] sm:$0xf]
        %v248 = vld [vmem:[%s215 + $0x18] sm:$0xff]
        %v249 = vld [vmem:[%s215 + $0x20] sm:$0xf]
        %v250 = vld [vmem:[%s215 + $0x24] sm:$0x11]
        %v251 = vld [vmem:[%s215 + $0x2c] sm:$0x1]
        %v252 = vld [vmem:[%s3] sm:$0xff]
        %v253 = vld [vmem:[%s3 + $0x8] sm:$0xff]
        %v254 = vld [vmem:[%s3 + $0x10] sm:$0xff]
        %v255 = vld [vmem:[%s3 + $0x18] sm:$0xff]
        %257 = vset.pattern.permute.xlu0 0
        %258 = vperm.xlu0 %257, %v252
        %v259 = vpop.permute.xlu0 %258
        %262 = vset.pattern.permute.xlu0 0
        %263 = vperm.xlu0 %262, %v253
        %v264 = vpop.permute.xlu0 %263
        %267 = vset.pattern.permute.xlu0 0
        %268 = vperm.xlu0 %267, %v254
        %v269 = vpop.permute.xlu0 %268
        %272 = vset.pattern.permute.xlu0 0
        %273 = vperm.xlu0 %272, %v255
        %v274 = vpop.permute.xlu0 %273
        %v280 = vunpack.c.l.b16 %v240
        %v281 = vunpack.c.l.b16 %v241
        %v282 = vunpack.c.l.b16 %v242
        %v283 = vunpack.c.l.b16 %v243
        %v284 = vpack.c.b16 %v281, %v280
        %v285 = vpack.c.b16 %v283, %v282
        %v294 = vunpack.c.l.b16 %v244
        %v295 = vunpack.c.h.b16 %v244
        %v296 = vunpack.c.l.b16 %v245
        %v297 = vunpack.c.l.b16 %v246
        %v298 = vunpack.c.h.b16 %v246
        %v299 = vunpack.c.l.b16 %v247
        %v300 = vunpack.c.l.b16 %v248
        %v301 = vunpack.c.h.b16 %v248
        %v302 = vunpack.c.l.b16 %v249
        %v303 = vunpack.c.l.b16 %v250
        %v304 = vunpack.c.h.b16 %v250
        %v305 = vunpack.c.l.b16 %v251
        %v306 = vpack.c.b16 %v297, %v294
        %v307 = vpack.c.b16 %v298, %v295
        %v308 = vpack.c.b16 %v299, %v296
        %v309 = vpack.c.b16 %v303, %v300
        %v310 = vpack.c.b16 %v304, %v301
        %v311 = vpack.c.b16 %v305, %v302
        %vm315 = vcmask 203776
        %v317 = vsel %vm315, %v284, 0
        %v320 = vsel %vm315, %v285, 0
        %vm322 = vcmask 1043456
        %vm323 = vcmask 1044480
        %v324 = vsel %vm322, 4294967295, 65535
        %v325 = vsel %vm323, %v324, 0
        %v327 = vand.u32 %v309, %v325
        %v330 = vand.u32 %v310, %v325
        %v333 = vand.u32 %v311, %v325
        %335 = vmatprep.subr.bf16.mxu0 0
        %336 = vmatpush1.bf16.msra.mxu0 0
        %337 = vmatprep.subr.bf16.mxu0 0
        %338 = vmatpush1.bf16.msra.mxu0 0
        %339 = vmatprep.subr.bf16.mxu0 0
        %340 = vmatpush1.bf16.msra.mxu0 0
        %341 = vmatprep.subr.bf16.mxu0 0
        %342 = vmatpush1.bf16.msra.mxu0 0
        %343 = vmatprep.subr.bf16.mxu0 0
        %344 = vmatpush1.bf16.msra.mxu0 0
        %345 = vmatprep.subr.bf16.mxu0 0
        %346 = vmatpush1.bf16.msra.mxu0 0
        %347 = vmatprep.subr.bf16.mxu0 %v330
        %348 = vmatpush1.bf16.msra.mxu0 %v327
        %349 = vmatprep.subr.bf16.mxu0 %v307
        %350 = vmatpush1.bf16.msra.mxu0 %v306
        %351 = vmatprep.subr.bf16.mxu0 0
        %352 = vmatpush2.bf16.msra.mxu0 0
        %353 = vmatprep.subr.bf16.mxu0 0
        %354 = vmatpush2.bf16.msra.mxu0 0
        %355 = vmatprep.subr.bf16.mxu0 0
        %356 = vmatpush2.bf16.msra.mxu0 0
        %357 = vmatprep.subr.bf16.mxu0 0
        %358 = vmatpush2.bf16.msra.mxu0 0
        %359 = vmatprep.subr.bf16.mxu0 0
        %360 = vmatpush2.bf16.msra.mxu0 0
        %361 = vmatprep.subr.bf16.mxu0 0
        %362 = vmatpush2.bf16.msra.mxu0 0
        %363 = vmatprep.subr.bf16.mxu0 0
        %364 = vmatpush2.bf16.msra.mxu0 0
        %365 = vmatprep.subr.bf16.mxu0 0
        %366 = vmatpush2.bf16.msra.mxu0 0
        %367 = vmatprep.mubr.bf16.mxu0 0
        %368 = vmatmul.mubr.bf16.gmra.mxu0 %v317
        %v369 = vpop.f32.mrf.mxu0
        %v370 = vadd.f32 %v259, %v369
        %v371 = vpop.f32.mrf.mxu0
        %v372 = vadd.f32 %v259, %v371
        %v373 = vpop.f32.mrf.mxu0
        %v374 = vadd.f32 %v264, %v373
        %v375 = vpop.f32.mrf.mxu0
        %v376 = vadd.f32 %v264, %v375
        %377 = vmatprep.mubr.bf16.mxu0 0
        %378 = vmatmul.mubr.bf16.gmra.mxu0 %v320
        %v379 = vpop.f32.mrf.mxu0
        %v380 = vadd.f32 %v269, %v379
        %v381 = vpop.f32.mrf.mxu0
        %v382 = vadd.f32 %v269, %v381
        %v383 = vpop.f32.mrf.mxu0
        %v384 = vadd.f32 %v274, %v383
        %v385 = vpop.f32.mrf.mxu0
        %v386 = vadd.f32 %v274, %v385
        %387 = vdwg.mxu0
        %388 = vmatprep.subr.bf16.mxu0 0
        %389 = vmatpush1.bf16.msra.mxu0 0
        %390 = vmatprep.subr.bf16.mxu0 0
        %391 = vmatpush1.bf16.msra.mxu0 0
        %392 = vmatprep.subr.bf16.mxu0 0
        %393 = vmatpush1.bf16.msra.mxu0 0
        %394 = vmatprep.subr.bf16.mxu0 0
        %395 = vmatpush1.bf16.msra.mxu0 0
        %396 = vmatprep.subr.bf16.mxu0 0
        %397 = vmatpush1.bf16.msra.mxu0 0
        %398 = vmatprep.subr.bf16.mxu0 0
        %399 = vmatpush1.bf16.msra.mxu0 0
        %400 = vmatprep.subr.bf16.mxu0 0
        %401 = vmatpush1.bf16.msra.mxu0 %v333
        %402 = vmatprep.subr.bf16.mxu0 0
        %403 = vmatpush1.bf16.msra.mxu0 %v308
        %404 = vmatprep.subr.bf16.mxu0 0
        %405 = vmatpush2.bf16.msra.mxu0 0
        %406 = vmatprep.subr.bf16.mxu0 0
        %407 = vmatpush2.bf16.msra.mxu0 0
        %408 = vmatprep.subr.bf16.mxu0 0
        %409 = vmatpush2.bf16.msra.mxu0 0
        %410 = vmatprep.subr.bf16.mxu0 0
        %411 = vmatpush2.bf16.msra.mxu0 0
        %412 = vmatprep.subr.bf16.mxu0 0
        %413 = vmatpush2.bf16.msra.mxu0 0
        %414 = vmatprep.subr.bf16.mxu0 0
        %415 = vmatpush2.bf16.msra.mxu0 0
        %416 = vmatprep.subr.bf16.mxu0 0
        %417 = vmatpush2.bf16.msra.mxu0 0
        %418 = vmatprep.subr.bf16.mxu0 0
        %419 = vmatpush2.bf16.msra.mxu0 0
        %420 = vmatprep.mubr.bf16.mxu0 0
        %421 = vmatmul.mubr.bf16.gmra.mxu0 %v317
        %v422 = vpop.f32.mrf.mxu0
        %v423 = vadd.f32 %v259, %v422
        %v424 = vpop.f32.mrf.mxu0
        %v425 = vpop.f32.mrf.mxu0
        %v426 = vadd.f32 %v264, %v425
        %v427 = vpop.f32.mrf.mxu0
        %428 = vmatprep.mubr.bf16.mxu0 0
        %429 = vmatmul.mubr.bf16.gmra.mxu0 %v320
        %v430 = vpop.f32.mrf.mxu0
        %v431 = vadd.f32 %v269, %v430
        %v432 = vpop.f32.mrf.mxu0
        %v433 = vpop.f32.mrf.mxu0
        %v434 = vadd.f32 %v274, %v433
        %v435 = vpop.f32.mrf.mxu0
        %436 = vdwg.mxu0
        %s437 = sld [smem:[#allocation2]]
        %vm438 = vcmp.gt.f32.partialorder %v370, 0.0
        %vm439 = vcmp.gt.f32.partialorder %v372, 0.0
        %vm440 = vcmp.gt.f32.partialorder %v423, 0.0
        %vm441 = vcmp.gt.f32.partialorder %v374, 0.0
        %vm442 = vcmp.gt.f32.partialorder %v376, 0.0
        %vm443 = vcmp.gt.f32.partialorder %v426, 0.0
        %vm444 = vcmp.gt.f32.partialorder %v380, 0.0
        %vm445 = vcmp.gt.f32.partialorder %v382, 0.0
        %vm446 = vcmp.gt.f32.partialorder %v431, 0.0
        %vm447 = vcmp.gt.f32.partialorder %v384, 0.0
        %vm448 = vcmp.gt.f32.partialorder %v386, 0.0
        %vm449 = vcmp.gt.f32.partialorder %v434, 0.0
        %v450 = vstv %s437
        %v451 = vmul.f32 %v450, %v370
        %v452 = vmul.f32 %v450, %v372
        %v453 = vmul.f32 %v450, %v423
        %v454 = vmul.f32 %v450, %v374
        %v455 = vmul.f32 %v450, %v376
        %v456 = vmul.f32 %v450, %v426
        %v457 = vmul.f32 %v450, %v380
        %v458 = vmul.f32 %v450, %v382
        %v459 = vmul.f32 %v450, %v431
        %v460 = vmul.f32 %v450, %v384
        %v461 = vmul.f32 %v450, %v386
        %v462 = vmul.f32 %v450, %v434
        %v463 = vsel %vm438, %v370, %v451
        %v464 = vsel %vm439, %v372, %v452
        %v465 = vsel %vm440, %v423, %v453
        %v466 = vsel %vm441, %v374, %v454
        %v467 = vsel %vm442, %v376, %v455
        %v468 = vsel %vm443, %v426, %v456
        %v469 = vsel %vm444, %v380, %v457
        %v470 = vsel %vm445, %v382, %v458
        %v471 = vsel %vm446, %v431, %v459
        %v472 = vsel %vm447, %v384, %v460
        %v473 = vsel %vm448, %v386, %v461
        %v474 = vsel %vm449, %v434, %v462
        %475 = vst [vmem:[%s236] sm:$0xff] %v463
        %476 = vst [vmem:[%s236 + $0x8] sm:$0xff] %v464
        %477 = vst [vmem:[%s236 + $0x10] sm:$0xff] %v465
        %478 = vst [vmem:[%s236 + $0x18] sm:$0xff] %v466
        %479 = vst [vmem:[%s236 + $0x20] sm:$0xff] %v467
        %480 = vst [vmem:[%s236 + $0x28] sm:$0xff] %v468
        %481 = vst [vmem:[%s236 + $0x30] sm:$0xff] %v469
        %482 = vst [vmem:[%s236 + $0x38] sm:$0xff] %v470
        %483 = vst [vmem:[%s236 + $0x40] sm:$0xff] %v471
        %484 = vst [vmem:[%s236 + $0x48] sm:$0xff] %v472
        %485 = vst [vmem:[%s236 + $0x50] sm:$0xff] %v473
        %486 = vst [vmem:[%s236 + $0x58] sm:$0xff] %v474
        %s487 = sand.u32 %s113, 1
        %s488 = sand.u32 %s113, 1
        %s489 = smul.addr %s488, 96
        %s490 = scalar_lea.vmem [#allocation4], %s489
        // Predicated region
        $region63: #{embedding_net_l2.4} parent=57 // pred_check
          %p491 = pneg %p123
        $region64: #{embedding_net_l2.4} parent=57 // pred_check_branch
          %493 = sbr.rel (%p491) target = $region66
        $region65: #{embedding_net_l2.4} parent=57 // pred_region
          %s494 = smul.u32 3, %s16
          %s495 = smul.addr %s494, 8
          %s496 = scalar_lea.vmem %s4, %s495
          // Predicated region
          $region67: #{embedding_net_l2.4} parent=65 // pred_check
            _
          $region68: #{embedding_net_l2.4} parent=65 // pred_check_branch
            %498 = sbr.rel (0) target = $region70
          $region69: #{embedding_net_l2.4} parent=65 // pred_region
            // Predicated region
            $region71: #{embedding_net_l2.4} parent=69 // pred_check
              _
            $region72: #{embedding_net_l2.4} parent=69 // pred_check_branch
              %500 = sbr.rel (0) target = $region74
            $region73: #{embedding_net_l2.4} parent=69 // pred_region
              loop: start=0, step=1, limit=1
              $region75: #{embedding_net_l2.4} parent=73 // loop_pre_header
                _
              $region76: #{embedding_net_l2.4} parent=73 // loop_header
                %s502 = sphi 0, %s506
                %p503 = scmp.ge.s32.totalorder %s502, 1
                %s507 = sphi %s490, %s490
                %s508 = sphi %s496, %s496
              $region77: #{embedding_net_l2.4} parent=73 // loop_header_branch
                %505 = sbr.rel (%p503) target = $region81
              $region78: #{embedding_net_l2.4} parent=73 // loop_body
                %v509 = vld [vmem:[%s507] sm:$0xff]
                %510 = vst [vmem:[%s508] sm:$0xff] %v509
                %v511 = vld [vmem:[%s507 + $0x8] sm:$0xff]
                %512 = vst [vmem:[%s508 + $0x8] sm:$0xff] %v511
                %v513 = vld [vmem:[%s507 + $0x10] sm:$0xff]
                %514 = vst [vmem:[%s508 + $0x10] sm:$0xff] %v513
                %v515 = vld [vmem:[%s507 + $0x18] sm:$0xff]
                %516 = vst [vmem:[%s508 + $0x48] sm:$0xff] %v515
                %v517 = vld [vmem:[%s507 + $0x20] sm:$0xff]
                %518 = vst [vmem:[%s508 + $0x50] sm:$0xff] %v517
                %v519 = vld [vmem:[%s507 + $0x28] sm:$0xff]
                %520 = vst [vmem:[%s508 + $0x58] sm:$0xff] %v519
                %v521 = vld [vmem:[%s507 + $0x30] sm:$0xff]
                %522 = vst [vmem:[%s508 + $0x90] sm:$0xff] %v521
                %v523 = vld [vmem:[%s507 + $0x38] sm:$0xff]
                %524 = vst [vmem:[%s508 + $0x98] sm:$0xff] %v523
                %v525 = vld [vmem:[%s507 + $0x40] sm:$0xff]
                %526 = vst [vmem:[%s508 + $0xa0] sm:$0xff] %v525
                %v527 = vld [vmem:[%s507 + $0x48] sm:$0xff]
                %528 = vst [vmem:[%s508 + $0xd8] sm:$0xff] %v527
                %v529 = vld [vmem:[%s507 + $0x50] sm:$0xff]
                %530 = vst [vmem:[%s508 + $0xe0] sm:$0xff] %v529
                %v531 = vld [vmem:[%s507 + $0x58] sm:$0xff]
                %532 = vst [vmem:[%s508 + $0xe8] sm:$0xff] %v531
              $region79: #{embedding_net_l2.4} parent=73 // loop_footer
                %s506 = sadd.s32 1, %s502
              $region80: #{embedding_net_l2.4} parent=73 // loop_footer_branch
                %501 = sbr.rel target = $region76
              $region81: #{embedding_net_l2.4} parent=73 // loop_exit
                _
            $region74: #{embedding_net_l2.4} parent=69 // pred_fallthru
              _
            // Predicated region
            $region82: #{embedding_net_l2.4} parent=69 // pred_check
              _
            $region83: #{embedding_net_l2.4} parent=69 // pred_check_branch
              %534 = sbr.rel target = $region85
            $region84: #{embedding_net_l2.4} parent=69 // pred_region
              _
            $region85: #{embedding_net_l2.4} parent=69 // pred_fallthru
              _
          $region70: #{embedding_net_l2.4} parent=65 // pred_fallthru
            _
          %535 = vnop
        $region66: #{embedding_net_l2.4} parent=57 // pred_fallthru
          _
      $region58: #{embedding_net_l2.4} parent=5 // pred_fallthru
        _
      %p536 = scmp.le.s32.totalorder 2, %s11
      // Predicated region
      $region86: #{embedding_net_l2.4} parent=5 // pred_check
        %p537 = pneg %p536
      $region87: #{embedding_net_l2.4} parent=5 // pred_check_branch
        %539 = sbr.rel (%p537) target = $region89
      $region88: #{embedding_net_l2.4} parent=5 // pred_region
        %s540 = ssub.s32 %s11, 2
        // Predicated region
        $region90: #{embedding_net_l2.4} parent=88 // pred_check
          %p541 = pneg %p129
        $region91: #{embedding_net_l2.4} parent=88 // pred_check_branch
          %543 = sbr.rel (%p541) target = $region93
        $region92: #{embedding_net_l2.4} parent=88 // pred_region
          %s544 = sand.u32 %s114, 1
          %s545 = sand.u32 %s114, 1
          %s546 = smul.addr %s545, 96
          %s547 = scalar_lea.vmem [#allocation4], %s546
        $region93: #{embedding_net_l2.4} parent=88 // pred_fallthru
          _
      $region89: #{embedding_net_l2.4} parent=5 // pred_fallthru
        _
    $region6: #{embedding_net_l2.4} parent=1 // loop_footer
      %s15 = sadd.s32 1, %s11
    $region7: #{embedding_net_l2.4} parent=1 // loop_footer_branch
      %10 = sbr.rel target = $region3
    $region8: #{embedding_net_l2.4} parent=1 // loop_exit
      _

// kernel: embedding_net_l2.5
$region0: #{embedding_net_l2.5}
  #allocation0 [shape = 'u32[]', space=smem, size = 0x4, offset = 0x4, fixed_abs, tag = 'smem constant byte address 0x4 - core index']
  #allocation1 [shape = 'u32[144,128]{1,0:T(1,128)}', space=vmem, size = 0x12000, scoped, tag = 'internal scratch']
  #allocation2 [shape = 'f32[1]{0:T(128)S(6)}', space=smem, size = 0x200, scoped, tag = 'scoped memory for embedding_net_l2.5']
  %s0 = inlined_call_operand.<no memory space> [shape: f32[1], index: 0, kind: input, shape index: {}]
  %s1 = inlined_call_operand.vmem [shape: bf16[800,128], index: 1, kind: input, shape index: {}]
  %s2 = inlined_call_operand.vmem [shape: bf16[64,800], index: 2, kind: input, shape index: {}]
  %s3 = inlined_call_operand.vmem [shape: f32[64,1], index: 3, kind: input, shape index: {}]
  %s4 = inlined_call_operand.vmem [shape: f32[64,128], index: 4, kind: output, shape index: {}]
  %s5 = sld [smem:[#allocation0]]
  $region26: #{embedding_net_l2.5} parent=0
    _
  %s7 = ssub.s32 1, %s5
  %s8 = scalar_select 0, %s7, %s5
  %9 = sst [smem:[#allocation2]] %s0
  // Predicated region
  $region2: #{embedding_net_l2.5} parent=0 // pred_check
    _
  $region3: #{embedding_net_l2.5} parent=0 // pred_check_branch
    %11 = sbr.rel (0) target = $region5
  $region4: #{embedding_net_l2.5} parent=0 // pred_region
    _
  $region5: #{embedding_net_l2.5} parent=0 // pred_fallthru
    _
  // Predicated region
  $region6: #{embedding_net_l2.5} parent=0 // pred_check
    _
  $region7: #{embedding_net_l2.5} parent=0 // pred_check_branch
    %13 = sbr.rel (0) target = $region9
  $region8: #{embedding_net_l2.5} parent=0 // pred_region
    _
  $region9: #{embedding_net_l2.5} parent=0 // pred_fallthru
    _
  // Predicated region
  $region10: #{embedding_net_l2.5} parent=0 // pred_check
    _
  $region11: #{embedding_net_l2.5} parent=0 // pred_check_branch
    %15 = sbr.rel (0) target = $region13
  $region12: #{embedding_net_l2.5} parent=0 // pred_region
    _
  $region13: #{embedding_net_l2.5} parent=0 // pred_fallthru
    _
  // Predicated region
  $region14: #{embedding_net_l2.5} parent=0 // pred_check
    _
  $region15: #{embedding_net_l2.5} parent=0 // pred_check_branch
    %17 = sbr.rel (0) target = $region17
  $region16: #{embedding_net_l2.5} parent=0 // pred_region
    _
  $region17: #{embedding_net_l2.5} parent=0 // pred_fallthru
    _
  %v19 = vld [vmem:[%s2] sm:$0xff]
  %v20 = vld [vmem:[%s2 + $0x8] sm:$0xff]
  %v21 = vld [vmem:[%s2 + $0x10] sm:$0xff]
  %v22 = vld [vmem:[%s2 + $0x18] sm:$0xf]
  %v23 = vld [vmem:[%s2 + $0x1c] sm:$0xff]
  %v24 = vld [vmem:[%s2 + $0x24] sm:$0xff]
  %v25 = vld [vmem:[%s2 + $0x2c] sm:$0xff]
  %v26 = vld [vmem:[%s2 + $0x34] sm:$0xf]
  %v27 = vld [vmem:[%s2 + $0x38] sm:$0xff]
  %v28 = vld [vmem:[%s2 + $0x40] sm:$0xff]
  %v29 = vld [vmem:[%s2 + $0x48] sm:$0xff]
  %v30 = vld [vmem:[%s2 + $0x50] sm:$0xf]
  %v31 = vld [vmem:[%s2 + $0x54] sm:$0xff]
  %v32 = vld [vmem:[%s2 + $0x5c] sm:$0xff]
  %v33 = vld [vmem:[%s2 + $0x64] sm:$0xff]
  %v34 = vld [vmem:[%s2 + $0x6c] sm:$0xf]
  %v35 = vld [vmem:[%s2 + $0x70] sm:$0xff]
  %v36 = vld [vmem:[%s2 + $0x78] sm:$0xff]
  %v37 = vld [vmem:[%s2 + $0x80] sm:$0xff]
  %v38 = vld [vmem:[%s2 + $0x88] sm:$0xf]
  %v39 = vld [vmem:[%s2 + $0x8c] sm:$0xff]
  %v40 = vld [vmem:[%s2 + $0x94] sm:$0xff]
  %v41 = vld [vmem:[%s2 + $0x9c] sm:$0xff]
  %v42 = vld [vmem:[%s2 + $0xa4] sm:$0xf]
  %v43 = vld [vmem:[%s2 + $0xa8] sm:$0xff]
  %v44 = vld [vmem:[%s2 + $0xb0] sm:$0xff]
  %v45 = vld [vmem:[%s2 + $0xb8] sm:$0xff]
  %v46 = vld [vmem:[%s2 + $0xc0] sm:$0xf]
  %v47 = vld [vmem:[%s2 + $0xc4] sm:$0xff]
  %v48 = vld [vmem:[%s2 + $0xcc] sm:$0xff]
  %v49 = vld [vmem:[%s2 + $0xd4] sm:$0xff]
  %v50 = vld [vmem:[%s2 + $0xdc] sm:$0xf]
  %v51 = vld [vmem:[%s1] sm:$0xf]
  %v52 = vld [vmem:[%s1 + $0x4] sm:$0xf]
  %v53 = vld [vmem:[%s1 + $0x8] sm:$0xf]
  %v54 = vld [vmem:[%s1 + $0xc] sm:$0xf]
  %v55 = vld [vmem:[%s1 + $0x10] sm:$0xf]
  %v56 = vld [vmem:[%s1 + $0x14] sm:$0xf]
  %v57 = vld [vmem:[%s1 + $0x18] sm:$0xf]
  %v58 = vld [vmem:[%s1 + $0x1c] sm:$0xf]
  %v59 = vld [vmem:[%s1 + $0x20] sm:$0xf]
  %v60 = vld [vmem:[%s1 + $0x24] sm:$0xf]
  %v61 = vld [vmem:[%s1 + $0x28] sm:$0xf]
  %v62 = vld [vmem:[%s1 + $0x2c] sm:$0xf]
  %v63 = vld [vmem:[%s1 + $0x30] sm:$0xf]
  %v64 = vld [vmem:[%s1 + $0x34] sm:$0xf]
  %v65 = vld [vmem:[%s1 + $0x38] sm:$0xf]
  %v66 = vld [vmem:[%s1 + $0x3c] sm:$0xf]
  %v67 = vld [vmem:[%s1 + $0x40] sm:$0xf]
  %v68 = vld [vmem:[%s1 + $0x44] sm:$0xf]
  %v69 = vld [vmem:[%s1 + $0x48] sm:$0xf]
  %v70 = vld [vmem:[%s1 + $0x4c] sm:$0xf]
  %v71 = vld [vmem:[%s1 + $0x50] sm:$0xf]
  %v72 = vld [vmem:[%s1 + $0x54] sm:$0xf]
  %v73 = vld [vmem:[%s1 + $0x58] sm:$0xf]
  %v74 = vld [vmem:[%s1 + $0x5c] sm:$0xf]
  %v75 = vld [vmem:[%s1 + $0x60] sm:$0xf]
  %v76 = vld [vmem:[%s1 + $0x64] sm:$0xf]
  %v77 = vld [vmem:[%s1 + $0x68] sm:$0xf]
  %v78 = vld [vmem:[%s1 + $0x6c] sm:$0xf]
  %v79 = vld [vmem:[%s1 + $0x70] sm:$0xf]
  %v80 = vld [vmem:[%s1 + $0x74] sm:$0xf]
  %v81 = vld [vmem:[%s1 + $0x78] sm:$0xf]
  %v82 = vld [vmem:[%s1 + $0x7c] sm:$0xf]
  %v83 = vld [vmem:[%s1 + $0x80] sm:$0xf]
  %v84 = vld [vmem:[%s1 + $0x84] sm:$0xf]
  %v85 = vld [vmem:[%s1 + $0x88] sm:$0xf]
  %v86 = vld [vmem:[%s1 + $0x8c] sm:$0xf]
  %v87 = vld [vmem:[%s1 + $0x90] sm:$0xf]
  %v88 = vld [vmem:[%s1 + $0x94] sm:$0xf]
  %v89 = vld [vmem:[%s1 + $0x98] sm:$0xf]
  %v90 = vld [vmem:[%s1 + $0x9c] sm:$0xf]
  %v91 = vld [vmem:[%s1 + $0xa0] sm:$0xf]
  %v92 = vld [vmem:[%s1 + $0xa4] sm:$0xf]
  %v93 = vld [vmem:[%s1 + $0xa8] sm:$0xf]
  %v94 = vld [vmem:[%s1 + $0xac] sm:$0xf]
  %v95 = vld [vmem:[%s1 + $0xb0] sm:$0xf]
  %v96 = vld [vmem:[%s1 + $0xb4] sm:$0xf]
  %v97 = vld [vmem:[%s1 + $0xb8] sm:$0xf]
  %v98 = vld [vmem:[%s1 + $0xbc] sm:$0xf]
  %v99 = vld [vmem:[%s1 + $0xc0] sm:$0xf]
  %v100 = vld [vmem:[%s1 + $0xc4] sm:$0xf]
  %v101 = vld [vmem:[%s1 + $0xc8] sm:$0xf]
  %v102 = vld [vmem:[%s1 + $0xcc] sm:$0xf]
  %v103 = vld [vmem:[%s1 + $0xd0] sm:$0xf]
  %v104 = vld [vmem:[%s1 + $0xd4] sm:$0xf]
  %v105 = vld [vmem:[%s1 + $0xd8] sm:$0xf]
  %v106 = vld [vmem:[%s1 + $0xdc] sm:$0xf]
  %v107 = vld [vmem:[%s1 + $0xe0] sm:$0xf]
  %v108 = vld [vmem:[%s1 + $0xe4] sm:$0xf]
  %v109 = vld [vmem:[%s1 + $0xe8] sm:$0xf]
  %v110 = vld [vmem:[%s1 + $0xec] sm:$0xf]
  %v111 = vld [vmem:[%s1 + $0xf0] sm:$0xf]
  %v112 = vld [vmem:[%s1 + $0xf4] sm:$0xf]
  %v113 = vld [vmem:[%s1 + $0xf8] sm:$0xf]
  %v114 = vld [vmem:[%s1 + $0xfc] sm:$0xf]
  %v115 = vld [vmem:[%s1 + $0x100] sm:$0xf]
  %v116 = vld [vmem:[%s1 + $0x104] sm:$0xf]
  %v117 = vld [vmem:[%s1 + $0x108] sm:$0xf]
  %v118 = vld [vmem:[%s1 + $0x10c] sm:$0xf]
  %v119 = vld [vmem:[%s1 + $0x110] sm:$0xf]
  %v120 = vld [vmem:[%s1 + $0x114] sm:$0xf]
  %v121 = vld [vmem:[%s1 + $0x118] sm:$0xf]
  %v122 = vld [vmem:[%s1 + $0x11c] sm:$0xf]
  %v123 = vld [vmem:[%s1 + $0x120] sm:$0xf]
  %v124 = vld [vmem:[%s1 + $0x124] sm:$0xf]
  %v125 = vld [vmem:[%s1 + $0x128] sm:$0xf]
  %v126 = vld [vmem:[%s1 + $0x12c] sm:$0xf]
  %v127 = vld [vmem:[%s1 + $0x130] sm:$0xf]
  %v128 = vld [vmem:[%s1 + $0x134] sm:$0xf]
  %v129 = vld [vmem:[%s1 + $0x138] sm:$0xf]
  %v130 = vld [vmem:[%s1 + $0x13c] sm:$0xf]
  %v131 = vld [vmem:[%s1 + $0x140] sm:$0xf]
  %v132 = vld [vmem:[%s1 + $0x144] sm:$0xf]
  %v133 = vld [vmem:[%s1 + $0x148] sm:$0xf]
  %v134 = vld [vmem:[%s1 + $0x14c] sm:$0xf]
  %v135 = vld [vmem:[%s1 + $0x150] sm:$0xf]
  %v136 = vld [vmem:[%s1 + $0x154] sm:$0xf]
  %v137 = vld [vmem:[%s1 + $0x158] sm:$0xf]
  %v138 = vld [vmem:[%s1 + $0x15c] sm:$0xf]
  %v139 = vld [vmem:[%s1 + $0x160] sm:$0xf]
  %v140 = vld [vmem:[%s1 + $0x164] sm:$0xf]
  %v141 = vld [vmem:[%s1 + $0x168] sm:$0xf]
  %v142 = vld [vmem:[%s1 + $0x16c] sm:$0xf]
  %v143 = vld [vmem:[%s1 + $0x170] sm:$0xf]
  %v144 = vld [vmem:[%s1 + $0x174] sm:$0xf]
  %v145 = vld [vmem:[%s1 + $0x178] sm:$0xf]
  %v146 = vld [vmem:[%s1 + $0x17c] sm:$0xf]
  %v147 = vld [vmem:[%s1 + $0x180] sm:$0xf]
  %v148 = vld [vmem:[%s1 + $0x184] sm:$0xf]
  %v149 = vld [vmem:[%s1 + $0x188] sm:$0xf]
  %v150 = vld [vmem:[%s1 + $0x18c] sm:$0xf]
  %v151 = vld [vmem:[%s3] sm:$0xff]
  %v152 = vld [vmem:[%s3 + $0x8] sm:$0xff]
  %v153 = vld [vmem:[%s3 + $0x10] sm:$0xff]
  %v154 = vld [vmem:[%s3 + $0x18] sm:$0xff]
  %v155 = vld [vmem:[%s3 + $0x20] sm:$0xff]
  %v156 = vld [vmem:[%s3 + $0x28] sm:$0xff]
  %v157 = vld [vmem:[%s3 + $0x30] sm:$0xff]
  %v158 = vld [vmem:[%s3 + $0x38] sm:$0xff]
  %160 = vset.pattern.permute.xlu0 0
  %161 = vperm.xlu0 %160, %v151
  %v162 = vpop.permute.xlu0 %161
  %165 = vset.pattern.permute.xlu0 0
  %166 = vperm.xlu0 %165, %v152
  %v167 = vpop.permute.xlu0 %166
  %170 = vset.pattern.permute.xlu0 0
  %171 = vperm.xlu0 %170, %v153
  %v172 = vpop.permute.xlu0 %171
  %175 = vset.pattern.permute.xlu0 0
  %176 = vperm.xlu0 %175, %v154
  %v177 = vpop.permute.xlu0 %176
  %180 = vset.pattern.permute.xlu0 0
  %181 = vperm.xlu0 %180, %v155
  %v182 = vpop.permute.xlu0 %181
  %185 = vset.pattern.permute.xlu0 0
  %186 = vperm.xlu0 %185, %v156
  %v187 = vpop.permute.xlu0 %186
  %190 = vset.pattern.permute.xlu0 0
  %191 = vperm.xlu0 %190, %v157
  %v192 = vpop.permute.xlu0 %191
  %195 = vset.pattern.permute.xlu0 0
  %196 = vperm.xlu0 %195, %v158
  %v197 = vpop.permute.xlu0 %196
  %v231 = vunpack.c.l.b16 %v19
  %v232 = vunpack.c.h.b16 %v19
  %v233 = vunpack.c.l.b16 %v20
  %v234 = vunpack.c.h.b16 %v20
  %v235 = vunpack.c.l.b16 %v21
  %v236 = vunpack.c.h.b16 %v21
  %v237 = vunpack.c.l.b16 %v22
  %v238 = vunpack.c.l.b16 %v23
  %v239 = vunpack.c.h.b16 %v23
  %v240 = vunpack.c.l.b16 %v24
  %v241 = vunpack.c.h.b16 %v24
  %v242 = vunpack.c.l.b16 %v25
  %v243 = vunpack.c.h.b16 %v25
  %v244 = vunpack.c.l.b16 %v26
  %v245 = vunpack.c.l.b16 %v27
  %v246 = vunpack.c.h.b16 %v27
  %v247 = vunpack.c.l.b16 %v28
  %v248 = vunpack.c.h.b16 %v28
  %v249 = vunpack.c.l.b16 %v29
  %v250 = vunpack.c.h.b16 %v29
  %v251 = vunpack.c.l.b16 %v30
  %v252 = vunpack.c.l.b16 %v31
  %v253 = vunpack.c.h.b16 %v31
  %v254 = vunpack.c.l.b16 %v32
  %v255 = vunpack.c.h.b16 %v32
  %v256 = vunpack.c.l.b16 %v33
  %v257 = vunpack.c.h.b16 %v33
  %v258 = vunpack.c.l.b16 %v34
  %v259 = vunpack.c.l.b16 %v35
  %v260 = vunpack.c.h.b16 %v35
  %v261 = vunpack.c.l.b16 %v36
  %v262 = vunpack.c.h.b16 %v36
  %v263 = vunpack.c.l.b16 %v37
  %v264 = vunpack.c.h.b16 %v37
  %v265 = vunpack.c.l.b16 %v38
  %v266 = vunpack.c.l.b16 %v39
  %v267 = vunpack.c.h.b16 %v39
  %v268 = vunpack.c.l.b16 %v40
  %v269 = vunpack.c.h.b16 %v40
  %v270 = vunpack.c.l.b16 %v41
  %v271 = vunpack.c.h.b16 %v41
  %v272 = vunpack.c.l.b16 %v42
  %v273 = vunpack.c.l.b16 %v43
  %v274 = vunpack.c.h.b16 %v43
  %v275 = vunpack.c.l.b16 %v44
  %v276 = vunpack.c.h.b16 %v44
  %v277 = vunpack.c.l.b16 %v45
  %v278 = vunpack.c.h.b16 %v45
  %v279 = vunpack.c.l.b16 %v46
  %v280 = vunpack.c.l.b16 %v47
  %v281 = vunpack.c.h.b16 %v47
  %v282 = vunpack.c.l.b16 %v48
  %v283 = vunpack.c.h.b16 %v48
  %v284 = vunpack.c.l.b16 %v49
  %v285 = vunpack.c.h.b16 %v49
  %v286 = vunpack.c.l.b16 %v50
  %v287 = vpack.c.b16 %v238, %v231
  %v288 = vpack.c.b16 %v239, %v232
  %v289 = vpack.c.b16 %v240, %v233
  %v290 = vpack.c.b16 %v241, %v234
  %v291 = vpack.c.b16 %v242, %v235
  %v292 = vpack.c.b16 %v243, %v236
  %v293 = vpack.c.b16 %v244, %v237
  %v294 = vpack.c.b16 %v252, %v245
  %v295 = vpack.c.b16 %v253, %v246
  %v296 = vpack.c.b16 %v254, %v247
  %v297 = vpack.c.b16 %v255, %v248
  %v298 = vpack.c.b16 %v256, %v249
  %v299 = vpack.c.b16 %v257, %v250
  %v300 = vpack.c.b16 %v258, %v251
  %v301 = vpack.c.b16 %v266, %v259
  %v302 = vpack.c.b16 %v267, %v260
  %v303 = vpack.c.b16 %v268, %v261
  %v304 = vpack.c.b16 %v269, %v262
  %v305 = vpack.c.b16 %v270, %v263
  %v306 = vpack.c.b16 %v271, %v264
  %v307 = vpack.c.b16 %v272, %v265
  %v308 = vpack.c.b16 %v280, %v273
  %v309 = vpack.c.b16 %v281, %v274
  %v310 = vpack.c.b16 %v282, %v275
  %v311 = vpack.c.b16 %v283, %v276
  %v312 = vpack.c.b16 %v284, %v277
  %v313 = vpack.c.b16 %v285, %v278
  %v314 = vpack.c.b16 %v286, %v279
  %v439 = vunpack.c.l.b16 %v51
  %v440 = vunpack.c.l.b16 %v52
  %v441 = vunpack.c.l.b16 %v53
  %v442 = vunpack.c.l.b16 %v54
  %v443 = vunpack.c.l.b16 %v55
  %v444 = vunpack.c.l.b16 %v56
  %v445 = vunpack.c.l.b16 %v57
  %v446 = vunpack.c.l.b16 %v58
  %v447 = vunpack.c.l.b16 %v59
  %v448 = vunpack.c.l.b16 %v60
  %v449 = vunpack.c.l.b16 %v61
  %v450 = vunpack.c.l.b16 %v62
  %v451 = vunpack.c.l.b16 %v63
  %v452 = vunpack.c.l.b16 %v64
  %v453 = vunpack.c.l.b16 %v65
  %v454 = vunpack.c.l.b16 %v66
  %v455 = vunpack.c.l.b16 %v67
  %v456 = vunpack.c.l.b16 %v68
  %v457 = vunpack.c.l.b16 %v69
  %v458 = vunpack.c.l.b16 %v70
  %v459 = vunpack.c.l.b16 %v71
  %v460 = vunpack.c.l.b16 %v72
  %v461 = vunpack.c.l.b16 %v73
  %v462 = vunpack.c.l.b16 %v74
  %v463 = vunpack.c.l.b16 %v75
  %v464 = vunpack.c.l.b16 %v76
  %v465 = vunpack.c.l.b16 %v77
  %v466 = vunpack.c.l.b16 %v78
  %v467 = vunpack.c.l.b16 %v79
  %v468 = vunpack.c.l.b16 %v80
  %v469 = vunpack.c.l.b16 %v81
  %v470 = vunpack.c.l.b16 %v82
  %v471 = vunpack.c.l.b16 %v83
  %v472 = vunpack.c.l.b16 %v84
  %v473 = vunpack.c.l.b16 %v85
  %v474 = vunpack.c.l.b16 %v86
  %v475 = vunpack.c.l.b16 %v87
  %v476 = vunpack.c.l.b16 %v88
  %v477 = vunpack.c.l.b16 %v89
  %v478 = vunpack.c.l.b16 %v90
  %v479 = vunpack.c.l.b16 %v91
  %v480 = vunpack.c.l.b16 %v92
  %v481 = vunpack.c.l.b16 %v93
  %v482 = vunpack.c.l.b16 %v94
  %v483 = vunpack.c.l.b16 %v95
  %v484 = vunpack.c.l.b16 %v96
  %v485 = vunpack.c.l.b16 %v97
  %v486 = vunpack.c.l.b16 %v98
  %v487 = vunpack.c.l.b16 %v99
  %v488 = vunpack.c.l.b16 %v100
  %v489 = vunpack.c.l.b16 %v101
  %v490 = vunpack.c.l.b16 %v102
  %v491 = vunpack.c.l.b16 %v103
  %v492 = vunpack.c.l.b16 %v104
  %v493 = vunpack.c.l.b16 %v105
  %v494 = vunpack.c.l.b16 %v106
  %v495 = vunpack.c.l.b16 %v107
  %v496 = vunpack.c.l.b16 %v108
  %v497 = vunpack.c.l.b16 %v109
  %v498 = vunpack.c.l.b16 %v110
  %v499 = vunpack.c.l.b16 %v111
  %v500 = vunpack.c.l.b16 %v112
  %v501 = vunpack.c.l.b16 %v113
  %v502 = vunpack.c.l.b16 %v114
  %v503 = vunpack.c.l.b16 %v115
  %v504 = vunpack.c.l.b16 %v116
  %v505 = vunpack.c.l.b16 %v117
  %v506 = vunpack.c.l.b16 %v118
  %v507 = vunpack.c.l.b16 %v119
  %v508 = vunpack.c.l.b16 %v120
  %v509 = vunpack.c.l.b16 %v121
  %v510 = vunpack.c.l.b16 %v122
  %v511 = vunpack.c.l.b16 %v123
  %v512 = vunpack.c.l.b16 %v124
  %v513 = vunpack.c.l.b16 %v125
  %v514 = vunpack.c.l.b16 %v126
  %v515 = vunpack.c.l.b16 %v127
  %v516 = vunpack.c.l.b16 %v128
  %v517 = vunpack.c.l.b16 %v129
  %v518 = vunpack.c.l.b16 %v130
  %v519 = vunpack.c.l.b16 %v131
  %v520 = vunpack.c.l.b16 %v132
  %v521 = vunpack.c.l.b16 %v133
  %v522 = vunpack.c.l.b16 %v134
  %v523 = vunpack.c.l.b16 %v135
  %v524 = vunpack.c.l.b16 %v136
  %v525 = vunpack.c.l.b16 %v137
  %v526 = vunpack.c.l.b16 %v138
  %v527 = vunpack.c.l.b16 %v139
  %v528 = vunpack.c.l.b16 %v140
  %v529 = vunpack.c.l.b16 %v141
  %v530 = vunpack.c.l.b16 %v142
  %v531 = vunpack.c.l.b16 %v143
  %v532 = vunpack.c.l.b16 %v144
  %v533 = vunpack.c.l.b16 %v145
  %v534 = vunpack.c.l.b16 %v146
  %v535 = vunpack.c.l.b16 %v147
  %v536 = vunpack.c.l.b16 %v148
  %v537 = vunpack.c.l.b16 %v149
  %v538 = vunpack.c.l.b16 %v150
  %v539 = vpack.c.b16 %v440, %v439
  %v540 = vpack.c.b16 %v442, %v441
  %v541 = vpack.c.b16 %v444, %v443
  %v542 = vpack.c.b16 %v446, %v445
  %v543 = vpack.c.b16 %v448, %v447
  %v544 = vpack.c.b16 %v450, %v449
  %v545 = vpack.c.b16 %v452, %v451
  %v546 = vpack.c.b16 %v454, %v453
  %v547 = vpack.c.b16 %v456, %v455
  %v548 = vpack.c.b16 %v458, %v457
  %v549 = vpack.c.b16 %v460, %v459
  %v550 = vpack.c.b16 %v462, %v461
  %v551 = vpack.c.b16 %v464, %v463
  %v552 = vpack.c.b16 %v466, %v465
  %v553 = vpack.c.b16 %v468, %v467
  %v554 = vpack.c.b16 %v470, %v469
  %v555 = vpack.c.b16 %v472, %v471
  %v556 = vpack.c.b16 %v474, %v473
  %v557 = vpack.c.b16 %v476, %v475
  %v558 = vpack.c.b16 %v478, %v477
  %v559 = vpack.c.b16 %v480, %v479
  %v560 = vpack.c.b16 %v482, %v481
  %v561 = vpack.c.b16 %v484, %v483
  %v562 = vpack.c.b16 %v486, %v485
  %v563 = vpack.c.b16 %v488, %v487
  %v564 = vpack.c.b16 %v490, %v489
  %v565 = vpack.c.b16 %v492, %v491
  %v566 = vpack.c.b16 %v494, %v493
  %v567 = vpack.c.b16 %v496, %v495
  %v568 = vpack.c.b16 %v498, %v497
  %v569 = vpack.c.b16 %v500, %v499
  %v570 = vpack.c.b16 %v502, %v501
  %v571 = vpack.c.b16 %v504, %v503
  %v572 = vpack.c.b16 %v506, %v505
  %v573 = vpack.c.b16 %v508, %v507
  %v574 = vpack.c.b16 %v510, %v509
  %v575 = vpack.c.b16 %v512, %v511
  %v576 = vpack.c.b16 %v514, %v513
  %v577 = vpack.c.b16 %v516, %v515
  %v578 = vpack.c.b16 %v518, %v517
  %v579 = vpack.c.b16 %v520, %v519
  %v580 = vpack.c.b16 %v522, %v521
  %v581 = vpack.c.b16 %v524, %v523
  %v582 = vpack.c.b16 %v526, %v525
  %v583 = vpack.c.b16 %v528, %v527
  %v584 = vpack.c.b16 %v530, %v529
  %v585 = vpack.c.b16 %v532, %v531
  %v586 = vpack.c.b16 %v534, %v533
  %v587 = vpack.c.b16 %v536, %v535
  %v588 = vpack.c.b16 %v538, %v537
  %vm639 = vcmask 261120
  %v641 = vsel %vm639, %v293, 0
  %v644 = vsel %vm639, %v300, 0
  %v647 = vsel %vm639, %v307, 0
  %v650 = vsel %vm639, %v314, 0
  %652 = vmatprep.subr.bf16.mxu0 0
  %653 = vmatpush1.bf16.msra.mxu0 %v546
  %654 = vmatprep.subr.bf16.mxu0 0
  %655 = vmatpush1.bf16.msra.mxu0 %v545
  %656 = vmatprep.subr.bf16.mxu0 0
  %657 = vmatpush1.bf16.msra.mxu0 %v544
  %658 = vmatprep.subr.bf16.mxu0 0
  %659 = vmatpush1.bf16.msra.mxu0 %v543
  %660 = vmatprep.subr.bf16.mxu0 0
  %661 = vmatpush1.bf16.msra.mxu0 %v542
  %662 = vmatprep.subr.bf16.mxu0 0
  %663 = vmatpush1.bf16.msra.mxu0 %v541
  %664 = vmatprep.subr.bf16.mxu0 0
  %665 = vmatpush1.bf16.msra.mxu0 %v540
  %666 = vmatprep.subr.bf16.mxu0 0
  %667 = vmatpush1.bf16.msra.mxu0 %v539
  %668 = vmatprep.subr.bf16.mxu0 0
  %669 = vmatpush2.bf16.msra.mxu0 %v554
  %670 = vmatprep.subr.bf16.mxu0 0
  %671 = vmatpush2.bf16.msra.mxu0 %v553
  %672 = vmatprep.subr.bf16.mxu0 0
  %673 = vmatpush2.bf16.msra.mxu0 %v552
  %674 = vmatprep.subr.bf16.mxu0 0
  %675 = vmatpush2.bf16.msra.mxu0 %v551
  %676 = vmatprep.subr.bf16.mxu0 0
  %677 = vmatpush2.bf16.msra.mxu0 %v550
  %678 = vmatprep.subr.bf16.mxu0 0
  %679 = vmatpush2.bf16.msra.mxu0 %v549
  %680 = vmatprep.subr.bf16.mxu0 0
  %681 = vmatpush2.bf16.msra.mxu0 %v548
  %682 = vmatprep.subr.bf16.mxu0 0
  %683 = vmatpush2.bf16.msra.mxu0 %v547
  %684 = vmatprep.mubr.bf16.mxu0 %v288
  %685 = vmatmul.mubr.bf16.gmra.mxu0 %v287
  %v686 = vpop.f32.mrf.mxu0
  %v687 = vadd.f32 %v162, %v686
  %v688 = vpop.f32.mrf.mxu0
  %v689 = vpop.f32.mrf.mxu0
  %v690 = vadd.f32 %v167, %v689
  %v691 = vpop.f32.mrf.mxu0
  %692 = vmatprep.mubr.bf16.mxu0 %v295
  %693 = vmatmul.mubr.bf16.gmra.mxu0 %v294
  %v694 = vpop.f32.mrf.mxu0
  %v695 = vadd.f32 %v172, %v694
  %v696 = vpop.f32.mrf.mxu0
  %v697 = vpop.f32.mrf.mxu0
  %v698 = vadd.f32 %v177, %v697
  %v699 = vpop.f32.mrf.mxu0
  %700 = vmatprep.mubr.bf16.mxu0 %v302
  %701 = vmatmul.mubr.bf16.gmra.mxu0 %v301
  %v702 = vpop.f32.mrf.mxu0
  %v703 = vadd.f32 %v182, %v702
  %v704 = vpop.f32.mrf.mxu0
  %v705 = vpop.f32.mrf.mxu0
  %v706 = vadd.f32 %v187, %v705
  %v707 = vpop.f32.mrf.mxu0
  %708 = vmatprep.mubr.bf16.mxu0 %v309
  %709 = vmatmul.mubr.bf16.gmra.mxu0 %v308
  %v710 = vpop.f32.mrf.mxu0
  %v711 = vadd.f32 %v192, %v710
  %v712 = vpop.f32.mrf.mxu0
  %v713 = vpop.f32.mrf.mxu0
  %v714 = vadd.f32 %v197, %v713
  %v715 = vpop.f32.mrf.mxu0
  %716 = vdwg.mxu0
  %717 = vmatprep.subr.bf16.mxu0 0
  %718 = vmatpush1.bf16.msra.mxu0 %v562
  %719 = vmatprep.subr.bf16.mxu0 0
  %720 = vmatpush1.bf16.msra.mxu0 %v561
  %721 = vmatprep.subr.bf16.mxu0 0
  %722 = vmatpush1.bf16.msra.mxu0 %v560
  %723 = vmatprep.subr.bf16.mxu0 0
  %724 = vmatpush1.bf16.msra.mxu0 %v559
  %725 = vmatprep.subr.bf16.mxu0 0
  %726 = vmatpush1.bf16.msra.mxu0 %v558
  %727 = vmatprep.subr.bf16.mxu0 0
  %728 = vmatpush1.bf16.msra.mxu0 %v557
  %729 = vmatprep.subr.bf16.mxu0 0
  %730 = vmatpush1.bf16.msra.mxu0 %v556
  %731 = vmatprep.subr.bf16.mxu0 0
  %732 = vmatpush1.bf16.msra.mxu0 %v555
  %733 = vmatprep.subr.bf16.mxu0 0
  %734 = vmatpush2.bf16.msra.mxu0 %v570
  %735 = vmatprep.subr.bf16.mxu0 0
  %736 = vmatpush2.bf16.msra.mxu0 %v569
  %737 = vmatprep.subr.bf16.mxu0 0
  %738 = vmatpush2.bf16.msra.mxu0 %v568
  %739 = vmatprep.subr.bf16.mxu0 0
  %740 = vmatpush2.bf16.msra.mxu0 %v567
  %741 = vmatprep.subr.bf16.mxu0 0
  %742 = vmatpush2.bf16.msra.mxu0 %v566
  %743 = vmatprep.subr.bf16.mxu0 0
  %744 = vmatpush2.bf16.msra.mxu0 %v565
  %745 = vmatprep.subr.bf16.mxu0 0
  %746 = vmatpush2.bf16.msra.mxu0 %v564
  %747 = vmatprep.subr.bf16.mxu0 0
  %748 = vmatpush2.bf16.msra.mxu0 %v563
  %749 = vmatprep.mubr.bf16.mxu0 %v290
  %750 = vmatmul.mubr.bf16.gmra.mxu0 %v289
  %v751 = vpop.f32.mrf.mxu0
  %v752 = vadd.f32 %v687, %v751
  %v753 = vpop.f32.mrf.mxu0
  %v754 = vpop.f32.mrf.mxu0
  %v755 = vadd.f32 %v690, %v754
  %v756 = vpop.f32.mrf.mxu0
  %757 = vmatprep.mubr.bf16.mxu0 %v297
  %758 = vmatmul.mubr.bf16.gmra.mxu0 %v296
  %v759 = vpop.f32.mrf.mxu0
  %v760 = vadd.f32 %v695, %v759
  %v761 = vpop.f32.mrf.mxu0
  %v762 = vpop.f32.mrf.mxu0
  %v763 = vadd.f32 %v698, %v762
  %v764 = vpop.f32.mrf.mxu0
  %765 = vmatprep.mubr.bf16.mxu0 %v304
  %766 = vmatmul.mubr.bf16.gmra.mxu0 %v303
  %v767 = vpop.f32.mrf.mxu0
  %v768 = vadd.f32 %v703, %v767
  %v769 = vpop.f32.mrf.mxu0
  %v770 = vpop.f32.mrf.mxu0
  %v771 = vadd.f32 %v706, %v770
  %v772 = vpop.f32.mrf.mxu0
  %773 = vmatprep.mubr.bf16.mxu0 %v311
  %774 = vmatmul.mubr.bf16.gmra.mxu0 %v310
  %v775 = vpop.f32.mrf.mxu0
  %v776 = vadd.f32 %v711, %v775
  %v777 = vpop.f32.mrf.mxu0
  %v778 = vpop.f32.mrf.mxu0
  %v779 = vadd.f32 %v714, %v778
  %v780 = vpop.f32.mrf.mxu0
  %781 = vdwg.mxu0
  %782 = vmatprep.subr.bf16.mxu0 0
  %783 = vmatpush1.bf16.msra.mxu0 %v578
  %784 = vmatprep.subr.bf16.mxu0 0
  %785 = vmatpush1.bf16.msra.mxu0 %v577
  %786 = vmatprep.subr.bf16.mxu0 0
  %787 = vmatpush1.bf16.msra.mxu0 %v576
  %788 = vmatprep.subr.bf16.mxu0 0
  %789 = vmatpush1.bf16.msra.mxu0 %v575
  %790 = vmatprep.subr.bf16.mxu0 0
  %791 = vmatpush1.bf16.msra.mxu0 %v574
  %792 = vmatprep.subr.bf16.mxu0 0
  %793 = vmatpush1.bf16.msra.mxu0 %v573
  %794 = vmatprep.subr.bf16.mxu0 0
  %795 = vmatpush1.bf16.msra.mxu0 %v572
  %796 = vmatprep.subr.bf16.mxu0 0
  %797 = vmatpush1.bf16.msra.mxu0 %v571
  %798 = vmatprep.subr.bf16.mxu0 0
  %799 = vmatpush2.bf16.msra.mxu0 %v586
  %800 = vmatprep.subr.bf16.mxu0 0
  %801 = vmatpush2.bf16.msra.mxu0 %v585
  %802 = vmatprep.subr.bf16.mxu0 0
  %803 = vmatpush2.bf16.msra.mxu0 %v584
  %804 = vmatprep.subr.bf16.mxu0 0
  %805 = vmatpush2.bf16.msra.mxu0 %v583
  %806 = vmatprep.subr.bf16.mxu0 0
  %807 = vmatpush2.bf16.msra.mxu0 %v582
  %808 = vmatprep.subr.bf16.mxu0 0
  %809 = vmatpush2.bf16.msra.mxu0 %v581
  %810 = vmatprep.subr.bf16.mxu0 0
  %811 = vmatpush2.bf16.msra.mxu0 %v580
  %812 = vmatprep.subr.bf16.mxu0 0
  %813 = vmatpush2.bf16.msra.mxu0 %v579
  %814 = vmatprep.mubr.bf16.mxu0 %v292
  %815 = vmatmul.mubr.bf16.gmra.mxu0 %v291
  %v816 = vpop.f32.mrf.mxu0
  %v817 = vadd.f32 %v752, %v816
  %v818 = vpop.f32.mrf.mxu0
  %v819 = vpop.f32.mrf.mxu0
  %v820 = vadd.f32 %v755, %v819
  %v821 = vpop.f32.mrf.mxu0
  %822 = vmatprep.mubr.bf16.mxu0 %v299
  %823 = vmatmul.mubr.bf16.gmra.mxu0 %v298
  %v824 = vpop.f32.mrf.mxu0
  %v825 = vadd.f32 %v760, %v824
  %v826 = vpop.f32.mrf.mxu0
  %v827 = vpop.f32.mrf.mxu0
  %v828 = vadd.f32 %v763, %v827
  %v829 = vpop.f32.mrf.mxu0
  %830 = vmatprep.mubr.bf16.mxu0 %v306
  %831 = vmatmul.mubr.bf16.gmra.mxu0 %v305
  %v832 = vpop.f32.mrf.mxu0
  %v833 = vadd.f32 %v768, %v832
  %v834 = vpop.f32.mrf.mxu0
  %v835 = vpop.f32.mrf.mxu0
  %v836 = vadd.f32 %v771, %v835
  %v837 = vpop.f32.mrf.mxu0
  %838 = vmatprep.mubr.bf16.mxu0 %v313
  %839 = vmatmul.mubr.bf16.gmra.mxu0 %v312
  %v840 = vpop.f32.mrf.mxu0
  %v841 = vadd.f32 %v776, %v840
  %v842 = vpop.f32.mrf.mxu0
  %v843 = vpop.f32.mrf.mxu0
  %v844 = vadd.f32 %v779, %v843
  %v845 = vpop.f32.mrf.mxu0
  %846 = vdwg.mxu0
  %847 = vmatprep.subr.bf16.mxu0 0
  %848 = vmatpush1.bf16.msra.mxu0 0
  %849 = vmatprep.subr.bf16.mxu0 0
  %850 = vmatpush1.bf16.msra.mxu0 0
  %851 = vmatprep.subr.bf16.mxu0 0
  %852 = vmatpush1.bf16.msra.mxu0 0
  %853 = vmatprep.subr.bf16.mxu0 0
  %854 = vmatpush1.bf16.msra.mxu0 0
  %855 = vmatprep.subr.bf16.mxu0 0
  %856 = vmatpush1.bf16.msra.mxu0 0
  %857 = vmatprep.subr.bf16.mxu0 0
  %858 = vmatpush1.bf16.msra.mxu0 0
  %859 = vmatprep.subr.bf16.mxu0 0
  %860 = vmatpush1.bf16.msra.mxu0 %v588
  %861 = vmatprep.subr.bf16.mxu0 0
  %862 = vmatpush1.bf16.msra.mxu0 %v587
  %863 = vmatprep.subr.bf16.mxu0 0
  %864 = vmatpush2.bf16.msra.mxu0 0
  %865 = vmatprep.subr.bf16.mxu0 0
  %866 = vmatpush2.bf16.msra.mxu0 0
  %867 = vmatprep.subr.bf16.mxu0 0
  %868 = vmatpush2.bf16.msra.mxu0 0
  %869 = vmatprep.subr.bf16.mxu0 0
  %870 = vmatpush2.bf16.msra.mxu0 0
  %871 = vmatprep.subr.bf16.mxu0 0
  %872 = vmatpush2.bf16.msra.mxu0 0
  %873 = vmatprep.subr.bf16.mxu0 0
  %874 = vmatpush2.bf16.msra.mxu0 0
  %875 = vmatprep.subr.bf16.mxu0 0
  %876 = vmatpush2.bf16.msra.mxu0 0
  %877 = vmatprep.subr.bf16.mxu0 0
  %878 = vmatpush2.bf16.msra.mxu0 0
  %879 = vmatprep.mubr.bf16.mxu0 0
  %880 = vmatmul.mubr.bf16.gmra.mxu0 %v641
  %v881 = vpop.f32.mrf.mxu0
  %v882 = vadd.f32 %v817, %v881
  %v883 = vpop.f32.mrf.mxu0
  %v884 = vpop.f32.mrf.mxu0
  %v885 = vadd.f32 %v820, %v884
  %v886 = vpop.f32.mrf.mxu0
  %887 = vmatprep.mubr.bf16.mxu0 0
  %888 = vmatmul.mubr.bf16.gmra.mxu0 %v644
  %v889 = vpop.f32.mrf.mxu0
  %v890 = vadd.f32 %v825, %v889
  %v891 = vpop.f32.mrf.mxu0
  %v892 = vpop.f32.mrf.mxu0
  %v893 = vadd.f32 %v828, %v892
  %v894 = vpop.f32.mrf.mxu0
  %895 = vmatprep.mubr.bf16.mxu0 0
  %896 = vmatmul.mubr.bf16.gmra.mxu0 %v647
  %v897 = vpop.f32.mrf.mxu0
  %v898 = vadd.f32 %v833, %v897
  %v899 = vpop.f32.mrf.mxu0
  %v900 = vpop.f32.mrf.mxu0
  %v901 = vadd.f32 %v836, %v900
  %v902 = vpop.f32.mrf.mxu0
  %903 = vmatprep.mubr.bf16.mxu0 0
  %904 = vmatmul.mubr.bf16.gmra.mxu0 %v650
  %v905 = vpop.f32.mrf.mxu0
  %v906 = vadd.f32 %v841, %v905
  %v907 = vpop.f32.mrf.mxu0
  %v908 = vpop.f32.mrf.mxu0
  %v909 = vadd.f32 %v844, %v908
  %v910 = vpop.f32.mrf.mxu0
  %911 = vdwg.mxu0
  %s912 = sld [smem:[#allocation2]]
  %vm913 = vcmp.gt.f32.partialorder %v882, 0.0
  %vm914 = vcmp.gt.f32.partialorder %v885, 0.0
  %vm915 = vcmp.gt.f32.partialorder %v890, 0.0
  %vm916 = vcmp.gt.f32.partialorder %v893, 0.0
  %vm917 = vcmp.gt.f32.partialorder %v898, 0.0
  %vm918 = vcmp.gt.f32.partialorder %v901, 0.0
  %vm919 = vcmp.gt.f32.partialorder %v906, 0.0
  %vm920 = vcmp.gt.f32.partialorder %v909, 0.0
  %v921 = vstv %s912
  %v922 = vmul.f32 %v921, %v882
  %v923 = vmul.f32 %v921, %v885
  %v924 = vmul.f32 %v921, %v890
  %v925 = vmul.f32 %v921, %v893
  %v926 = vmul.f32 %v921, %v898
  %v927 = vmul.f32 %v921, %v901
  %v928 = vmul.f32 %v921, %v906
  %v929 = vmul.f32 %v921, %v909
  %v930 = vsel %vm913, %v882, %v922
  %v931 = vsel %vm914, %v885, %v923
  %v932 = vsel %vm915, %v890, %v924
  %v933 = vsel %vm916, %v893, %v925
  %v934 = vsel %vm917, %v898, %v926
  %v935 = vsel %vm918, %v901, %v927
  %v936 = vsel %vm919, %v906, %v928
  %v937 = vsel %vm920, %v909, %v929
  %938 = vst [vmem:[%s4] sm:$0xff] %v930
  %939 = vst [vmem:[%s4 + $0x8] sm:$0xff] %v931
  %940 = vst [vmem:[%s4 + $0x10] sm:$0xff] %v932
  %941 = vst [vmem:[%s4 + $0x18] sm:$0xff] %v933
  %942 = vst [vmem:[%s4 + $0x20] sm:$0xff] %v934
  %943 = vst [vmem:[%s4 + $0x28] sm:$0xff] %v935
  %944 = vst [vmem:[%s4 + $0x30] sm:$0xff] %v936
  %945 = vst [vmem:[%s4 + $0x38] sm:$0xff] %v937
  // Predicated region
  $region18: #{embedding_net_l2.5} parent=0 // pred_check
    _
  $region19: #{embedding_net_l2.5} parent=0 // pred_check_branch
    %947 = sbr.rel (0) target = $region21
  $region20: #{embedding_net_l2.5} parent=0 // pred_region
    _
  $region21: #{embedding_net_l2.5} parent=0 // pred_fallthru
    _
  // Predicated region
  $region22: #{embedding_net_l2.5} parent=0 // pred_check
    _
  $region23: #{embedding_net_l2.5} parent=0 // pred_check_branch
    %949 = sbr.rel (0) target = $region25
  $region24: #{embedding_net_l2.5} parent=0 // pred_region
    _
  $region25: #{embedding_net_l2.5} parent=0 // pred_fallthru
    _

// kernel: embedding_net_l2.6
$region0: #{embedding_net_l2.6}
  #allocation0 [shape = 'u32[]', space=smem, size = 0x4, offset = 0x4, fixed_abs, tag = 'smem constant byte address 0x4 - core index']
  #allocation1 [shape = 'u32[144,128]{1,0:T(1,128)}', space=vmem, size = 0x12000, scoped, tag = 'internal scratch']
  %s0 = inlined_call_operand.vmem [shape: f32[2], index: 0, kind: input, shape index: {}]
  %s1 = inlined_call_operand.vmem [shape: bf16[8,1024], index: 1, kind: input, shape index: {}]
  %s2 = inlined_call_operand.vmem [shape: bf16[1024,256], index: 2, kind: input, shape index: {}]
  %s3 = inlined_call_operand.vmem [shape: f32[1,256], index: 3, kind: input, shape index: {}]
  %s4 = inlined_call_operand.vmem [shape: bf16[256,256], index: 4, kind: input, shape index: {}]
  %s5 = inlined_call_operand.vmem [shape: f32[1,256], index: 5, kind: input, shape index: {}]
  %s6 = inlined_call_operand.vmem [shape: bf16[256,10], index: 6, kind: input, shape index: {}]
  %s7 = inlined_call_operand.vmem [shape: f32[1,10], index: 7, kind: input, shape index: {}]
  %s8 = inlined_call_operand.vmem [shape: f32[8,10], index: 8, kind: output, shape index: {}]
  %s9 = sld [smem:[#allocation0]]
  $region46: #{embedding_net_l2.6} parent=0
    _
  %s11 = ssub.s32 1, %s9
  %s12 = scalar_select 0, %s11, %s9
  $region1: #{embedding_net_l2.6} parent=0
    #allocation2 [shape = 'u8[512]{0}', space=smem, size = 0x200, scoped, tag = 'input window, operand 0, single buffered']
    #allocation3 [shape = 's32[1]{0}', space=sflag, size = 0x4, scoped, tag = 'scoped memory for embedding_net_l2.6']
    %13 = vsyncpa [#allocation3], 0
    // Predicated region
    $region2: #{embedding_net_l2.6} parent=1 // pred_check
      _
    $region3: #{embedding_net_l2.6} parent=1 // pred_check_branch
      %15 = sbr.rel (0) target = $region5
    $region4: #{embedding_net_l2.6} parent=1 // pred_region
      %s17 = ssub.s32 16, 16
      %18 = vsyncadd [#allocation3], %s17
      %s20 = sshll.u32 %s0, 4
      %s21 = int_to_ptr.vmem [resolvable:$true] %s20
      %23 = dma.vmem_to_smem %s21, 16, [#allocation2], [#allocation3]
    $region5: #{embedding_net_l2.6} parent=1 // pred_fallthru
      _
    // Predicated region
    $region6: #{embedding_net_l2.6} parent=1 // pred_check
      _
    $region7: #{embedding_net_l2.6} parent=1 // pred_check_branch
      %25 = sbr.rel (0) target = $region9
    $region8: #{embedding_net_l2.6} parent=1 // pred_region
      _
    $region9: #{embedding_net_l2.6} parent=1 // pred_fallthru
      _
    // Predicated region
    $region10: #{embedding_net_l2.6} parent=1 // pred_check
      _
    $region11: #{embedding_net_l2.6} parent=1 // pred_check_branch
      %27 = sbr.rel (0) target = $region13
    $region12: #{embedding_net_l2.6} parent=1 // pred_region
      _
    $region13: #{embedding_net_l2.6} parent=1 // pred_fallthru
      _
    // Predicated region
    $region14: #{embedding_net_l2.6} parent=1 // pred_check
      _
    $region15: #{embedding_net_l2.6} parent=1 // pred_check_branch
      %29 = sbr.rel (0) target = $region17
    $region16: #{embedding_net_l2.6} parent=1 // pred_region
      _
    $region17: #{embedding_net_l2.6} parent=1 // pred_fallthru
      _
    // Predicated region
    $region18: #{embedding_net_l2.6} parent=1 // pred_check
      _
    $region19: #{embedding_net_l2.6} parent=1 // pred_check_branch
      %31 = sbr.rel (0) target = $region21
    $region20: #{embedding_net_l2.6} parent=1 // pred_region
      _
    $region21: #{embedding_net_l2.6} parent=1 // pred_fallthru
      _
    // Predicated region
    $region22: #{embedding_net_l2.6} parent=1 // pred_check
      _
    $region23: #{embedding_net_l2.6} parent=1 // pred_check_branch
      %33 = sbr.rel (0) target = $region25
    $region24: #{embedding_net_l2.6} parent=1 // pred_region
      _
    $region25: #{embedding_net_l2.6} parent=1 // pred_fallthru
      _
    // Predicated region
    $region26: #{embedding_net_l2.6} parent=1 // pred_check
      _
    $region27: #{embedding_net_l2.6} parent=1 // pred_check_branch
      %35 = sbr.rel (0) target = $region29
    $region28: #{embedding_net_l2.6} parent=1 // pred_region
      _
    $region29: #{embedding_net_l2.6} parent=1 // pred_fallthru
      _
    // Predicated region
    $region30: #{embedding_net_l2.6} parent=1 // pred_check
      _
    $region31: #{embedding_net_l2.6} parent=1 // pred_check_branch
      %37 = sbr.rel (0) target = $region33
    $region32: #{embedding_net_l2.6} parent=1 // pred_region
      _
    $region33: #{embedding_net_l2.6} parent=1 // pred_fallthru
      _
    // Predicated region
    $region34: #{embedding_net_l2.6} parent=1 // pred_check
      _
    $region35: #{embedding_net_l2.6} parent=1 // pred_check_branch
      %39 = sbr.rel (0) target = $region37
    $region36: #{embedding_net_l2.6} parent=1 // pred_region
      %40 = dma.done [#allocation3], 16
    $region37: #{embedding_net_l2.6} parent=1 // pred_fallthru
      _
    %41 = sfence
    %s43 = sld [smem:[#allocation2]]
    %s44 = sld [smem:[#allocation2 + $0x1]]
    %v45 = vld [vmem:[%s1] sm:$0xff]
    %v46 = vld [vmem:[%s1 + $0x8] sm:$0xff]
    %v47 = vld [vmem:[%s1 + $0x10] sm:$0xff]
    %v48 = vld [vmem:[%s1 + $0x18] sm:$0xff]
    %v49 = vld [vmem:[%s2] sm:$0xff]
    %v50 = vld [vmem:[%s2 + $0x8] sm:$0xff]
    %v51 = vld [vmem:[%s2 + $0x10] sm:$0xff]
    %v52 = vld [vmem:[%s2 + $0x18] sm:$0xff]
    %v53 = vld [vmem:[%s2 + $0x20] sm:$0xff]
    %v54 = vld [vmem:[%s2 + $0x28] sm:$0xff]
    %v55 = vld [vmem:[%s2 + $0x30] sm:$0xff]
    %v56 = vld [vmem:[%s2 + $0x38] sm:$0xff]
    %v57 = vld [vmem:[%s2 + $0x40] sm:$0xff]
    %v58 = vld [vmem:[%s2 + $0x48] sm:$0xff]
    %v59 = vld [vmem:[%s2 + $0x50] sm:$0xff]
    %v60 = vld [vmem:[%s2 + $0x58] sm:$0xff]
    %v61 = vld [vmem:[%s2 + $0x60] sm:$0xff]
    %v62 = vld [vmem:[%s2 + $0x68] sm:$0xff]
    %v63 = vld [vmem:[%s2 + $0x70] sm:$0xff]
    %v64 = vld [vmem:[%s2 + $0x78] sm:$0xff]
    %v65 = vld [vmem:[%s2 + $0x80] sm:$0xff]
    %v66 = vld [vmem:[%s2 + $0x88] sm:$0xff]
    %v67 = vld [vmem:[%s2 + $0x90] sm:$0xff]
    %v68 = vld [vmem:[%s2 + $0x98] sm:$0xff]
    %v69 = vld [vmem:[%s2 + $0xa0] sm:$0xff]
    %v70 = vld [vmem:[%s2 + $0xa8] sm:$0xff]
    %v71 = vld [vmem:[%s2 + $0xb0] sm:$0xff]
    %v72 = vld [vmem:[%s2 + $0xb8] sm:$0xff]
    %v73 = vld [vmem:[%s2 + $0xc0] sm:$0xff]
    %v74 = vld [vmem:[%s2 + $0xc8] sm:$0xff]
    %v75 = vld [vmem:[%s2 + $0xd0] sm:$0xff]
    %v76 = vld [vmem:[%s2 + $0xd8] sm:$0xff]
    %v77 = vld [vmem:[%s2 + $0xe0] sm:$0xff]
    %v78 = vld [vmem:[%s2 + $0xe8] sm:$0xff]
    %v79 = vld [vmem:[%s2 + $0xf0] sm:$0xff]
    %v80 = vld [vmem:[%s2 + $0xf8] sm:$0xff]
    %v81 = vld [vmem:[%s2 + $0x100] sm:$0xff]
    %v82 = vld [vmem:[%s2 + $0x108] sm:$0xff]
    %v83 = vld [vmem:[%s2 + $0x110] sm:$0xff]
    %v84 = vld [vmem:[%s2 + $0x118] sm:$0xff]
    %v85 = vld [vmem:[%s2 + $0x120] sm:$0xff]
    %v86 = vld [vmem:[%s2 + $0x128] sm:$0xff]
    %v87 = vld [vmem:[%s2 + $0x130] sm:$0xff]
    %v88 = vld [vmem:[%s2 + $0x138] sm:$0xff]
    %v89 = vld [vmem:[%s2 + $0x140] sm:$0xff]
    %v90 = vld [vmem:[%s2 + $0x148] sm:$0xff]
    %v91 = vld [vmem:[%s2 + $0x150] sm:$0xff]
    %v92 = vld [vmem:[%s2 + $0x158] sm:$0xff]
    %v93 = vld [vmem:[%s2 + $0x160] sm:$0xff]
    %v94 = vld [vmem:[%s2 + $0x168] sm:$0xff]
    %v95 = vld [vmem:[%s2 + $0x170] sm:$0xff]
    %v96 = vld [vmem:[%s2 + $0x178] sm:$0xff]
    %v97 = vld [vmem:[%s2 + $0x180] sm:$0xff]
    %v98 = vld [vmem:[%s2 + $0x188] sm:$0xff]
    %v99 = vld [vmem:[%s2 + $0x190] sm:$0xff]
    %v100 = vld [vmem:[%s2 + $0x198] sm:$0xff]
    %v101 = vld [vmem:[%s2 + $0x1a0] sm:$0xff]
    %v102 = vld [vmem:[%s2 + $0x1a8] sm:$0xff]
    %v103 = vld [vmem:[%s2 + $0x1b0] sm:$0xff]
    %v104 = vld [vmem:[%s2 + $0x1b8] sm:$0xff]
    %v105 = vld [vmem:[%s2 + $0x1c0] sm:$0xff]
    %v106 = vld [vmem:[%s2 + $0x1c8] sm:$0xff]
    %v107 = vld [vmem:[%s2 + $0x1d0] sm:$0xff]
    %v108 = vld [vmem:[%s2 + $0x1d8] sm:$0xff]
    %v109 = vld [vmem:[%s2 + $0x1e0] sm:$0xff]
    %v110 = vld [vmem:[%s2 + $0x1e8] sm:$0xff]
    %v111 = vld [vmem:[%s2 + $0x1f0] sm:$0xff]
    %v112 = vld [vmem:[%s2 + $0x1f8] sm:$0xff]
    %v113 = vld [vmem:[%s2 + $0x200] sm:$0xff]
    %v114 = vld [vmem:[%s2 + $0x208] sm:$0xff]
    %v115 = vld [vmem:[%s2 + $0x210] sm:$0xff]
    %v116 = vld [vmem:[%s2 + $0x218] sm:$0xff]
    %v117 = vld [vmem:[%s2 + $0x220] sm:$0xff]
    %v118 = vld [vmem:[%s2 + $0x228] sm:$0xff]
    %v119 = vld [vmem:[%s2 + $0x230] sm:$0xff]
    %v120 = vld [vmem:[%s2 + $0x238] sm:$0xff]
    %v121 = vld [vmem:[%s2 + $0x240] sm:$0xff]
    %v122 = vld [vmem:[%s2 + $0x248] sm:$0xff]
    %v123 = vld [vmem:[%s2 + $0x250] sm:$0xff]
    %v124 = vld [vmem:[%s2 + $0x258] sm:$0xff]
    %v125 = vld [vmem:[%s2 + $0x260] sm:$0xff]
    %v126 = vld [vmem:[%s2 + $0x268] sm:$0xff]
    %v127 = vld [vmem:[%s2 + $0x270] sm:$0xff]
    %v128 = vld [vmem:[%s2 + $0x278] sm:$0xff]
    %v129 = vld [vmem:[%s2 + $0x280] sm:$0xff]
    %v130 = vld [vmem:[%s2 + $0x288] sm:$0xff]
    %v131 = vld [vmem:[%s2 + $0x290] sm:$0xff]
    %v132 = vld [vmem:[%s2 + $0x298] sm:$0xff]
    %v133 = vld [vmem:[%s2 + $0x2a0] sm:$0xff]
    %v134 = vld [vmem:[%s2 + $0x2a8] sm:$0xff]
    %v135 = vld [vmem:[%s2 + $0x2b0] sm:$0xff]
    %v136 = vld [vmem:[%s2 + $0x2b8] sm:$0xff]
    %v137 = vld [vmem:[%s2 + $0x2c0] sm:$0xff]
    %v138 = vld [vmem:[%s2 + $0x2c8] sm:$0xff]
    %v139 = vld [vmem:[%s2 + $0x2d0] sm:$0xff]
    %v140 = vld [vmem:[%s2 + $0x2d8] sm:$0xff]
    %v141 = vld [vmem:[%s2 + $0x2e0] sm:$0xff]
    %v142 = vld [vmem:[%s2 + $0x2e8] sm:$0xff]
    %v143 = vld [vmem:[%s2 + $0x2f0] sm:$0xff]
    %v144 = vld [vmem:[%s2 + $0x2f8] sm:$0xff]
    %v145 = vld [vmem:[%s2 + $0x300] sm:$0xff]
    %v146 = vld [vmem:[%s2 + $0x308] sm:$0xff]
    %v147 = vld [vmem:[%s2 + $0x310] sm:$0xff]
    %v148 = vld [vmem:[%s2 + $0x318] sm:$0xff]
    %v149 = vld [vmem:[%s2 + $0x320] sm:$0xff]
    %v150 = vld [vmem:[%s2 + $0x328] sm:$0xff]
    %v151 = vld [vmem:[%s2 + $0x330] sm:$0xff]
    %v152 = vld [vmem:[%s2 + $0x338] sm:$0xff]
    %v153 = vld [vmem:[%s2 + $0x340] sm:$0xff]
    %v154 = vld [vmem:[%s2 + $0x348] sm:$0xff]
    %v155 = vld [vmem:[%s2 + $0x350] sm:$0xff]
    %v156 = vld [vmem:[%s2 + $0x358] sm:$0xff]
    %v157 = vld [vmem:[%s2 + $0x360] sm:$0xff]
    %v158 = vld [vmem:[%s2 + $0x368] sm:$0xff]
    %v159 = vld [vmem:[%s2 + $0x370] sm:$0xff]
    %v160 = vld [vmem:[%s2 + $0x378] sm:$0xff]
    %v161 = vld [vmem:[%s2 + $0x380] sm:$0xff]
    %v162 = vld [vmem:[%s2 + $0x388] sm:$0xff]
    %v163 = vld [vmem:[%s2 + $0x390] sm:$0xff]
    %v164 = vld [vmem:[%s2 + $0x398] sm:$0xff]
    %v165 = vld [vmem:[%s2 + $0x3a0] sm:$0xff]
    %v166 = vld [vmem:[%s2 + $0x3a8] sm:$0xff]
    %v167 = vld [vmem:[%s2 + $0x3b0] sm:$0xff]
    %v168 = vld [vmem:[%s2 + $0x3b8] sm:$0xff]
    %v169 = vld [vmem:[%s2 + $0x3c0] sm:$0xff]
    %v170 = vld [vmem:[%s2 + $0x3c8] sm:$0xff]
    %v171 = vld [vmem:[%s2 + $0x3d0] sm:$0xff]
    %v172 = vld [vmem:[%s2 + $0x3d8] sm:$0xff]
    %v173 = vld [vmem:[%s2 + $0x3e0] sm:$0xff]
    %v174 = vld [vmem:[%s2 + $0x3e8] sm:$0xff]
    %v175 = vld [vmem:[%s2 + $0x3f0] sm:$0xff]
    %v176 = vld [vmem:[%s2 + $0x3f8] sm:$0xff]
    %v177 = vld [vmem:[%s3] sm:$0x3]
    %v179 = vlaneseq
    %v180 = vshrl.u32 %v179, 7
    %v181 = vsub.s32 0, %v180
    %v182 = vrot.slane %v177, %v181
    %v183 = vlaneseq
    %v184 = vshrl.u32 %v183, 7
    %v185 = vsub.s32 1, %v184
    %v186 = vrot.slane %v177, %v185
    %v193 = vunpack.c.l.b16 %v45
    %v194 = vunpack.c.h.b16 %v45
    %v195 = vunpack.c.l.b16 %v46
    %v196 = vunpack.c.h.b16 %v46
    %v197 = vunpack.c.l.b16 %v47
    %v198 = vunpack.c.h.b16 %v47
    %v199 = vunpack.c.l.b16 %v48
    %v200 = vunpack.c.h.b16 %v48
    %v201 = vpack.c.b16 %v193, %v193
    %v202 = vpack.c.b16 %v194, %v194
    %v203 = vpack.c.b16 %v195, %v195
    %v204 = vpack.c.b16 %v196, %v196
    %v205 = vpack.c.b16 %v197, %v197
    %v206 = vpack.c.b16 %v198, %v198
    %v207 = vpack.c.b16 %v199, %v199
    %v208 = vpack.c.b16 %v200, %v200
    %v345 = vunpack.c.l.b16 %v49
    %v346 = vunpack.c.h.b16 %v49
    %v347 = vunpack.c.l.b16 %v50
    %v348 = vunpack.c.h.b16 %v50
    %v349 = vunpack.c.l.b16 %v51
    %v350 = vunpack.c.h.b16 %v51
    %v351 = vunpack.c.l.b16 %v52
    %v352 = vunpack.c.h.b16 %v52
    %v353 = vunpack.c.l.b16 %v53
    %v354 = vunpack.c.h.b16 %v53
    %v355 = vunpack.c.l.b16 %v54
    %v356 = vunpack.c.h.b16 %v54
    %v357 = vunpack.c.l.b16 %v55
    %v358 = vunpack.c.h.b16 %v55
    %v359 = vunpack.c.l.b16 %v56
    %v360 = vunpack.c.h.b16 %v56
    %v361 = vunpack.c.l.b16 %v57
    %v362 = vunpack.c.h.b16 %v57
    %v363 = vunpack.c.l.b16 %v58
    %v364 = vunpack.c.h.b16 %v58
    %v365 = vunpack.c.l.b16 %v59
    %v366 = vunpack.c.h.b16 %v59
    %v367 = vunpack.c.l.b16 %v60
    %v368 = vunpack.c.h.b16 %v60
    %v369 = vunpack.c.l.b16 %v61
    %v370 = vunpack.c.h.b16 %v61
    %v371 = vunpack.c.l.b16 %v62
    %v372 = vunpack.c.h.b16 %v62
    %v373 = vunpack.c.l.b16 %v63
    %v374 = vunpack.c.h.b16 %v63
    %v375 = vunpack.c.l.b16 %v64
    %v376 = vunpack.c.h.b16 %v64
    %v377 = vunpack.c.l.b16 %v65
    %v378 = vunpack.c.h.b16 %v65
    %v379 = vunpack.c.l.b16 %v66
    %v380 = vunpack.c.h.b16 %v66
    %v381 = vunpack.c.l.b16 %v67
    %v382 = vunpack.c.h.b16 %v67
    %v383 = vunpack.c.l.b16 %v68
    %v384 = vunpack.c.h.b16 %v68
    %v385 = vunpack.c.l.b16 %v69
    %v386 = vunpack.c.h.b16 %v69
    %v387 = vunpack.c.l.b16 %v70
    %v388 = vunpack.c.h.b16 %v70
    %v389 = vunpack.c.l.b16 %v71
    %v390 = vunpack.c.h.b16 %v71
    %v391 = vunpack.c.l.b16 %v72
    %v392 = vunpack.c.h.b16 %v72
    %v393 = vunpack.c.l.b16 %v73
    %v394 = vunpack.c.h.b16 %v73
    %v395 = vunpack.c.l.b16 %v74
    %v396 = vunpack.c.h.b16 %v74
    %v397 = vunpack.c.l.b16 %v75
    %v398 = vunpack.c.h.b16 %v75
    %v399 = vunpack.c.l.b16 %v76
    %v400 = vunpack.c.h.b16 %v76
    %v401 = vunpack.c.l.b16 %v77
    %v402 = vunpack.c.h.b16 %v77
    %v403 = vunpack.c.l.b16 %v78
    %v404 = vunpack.c.h.b16 %v78
    %v405 = vunpack.c.l.b16 %v79
    %v406 = vunpack.c.h.b16 %v79
    %v407 = vunpack.c.l.b16 %v80
    %v408 = vunpack.c.h.b16 %v80
    %v409 = vunpack.c.l.b16 %v81
    %v410 = vunpack.c.h.b16 %v81
    %v411 = vunpack.c.l.b16 %v82
    %v412 = vunpack.c.h.b16 %v82
    %v413 = vunpack.c.l.b16 %v83
    %v414 = vunpack.c.h.b16 %v83
    %v415 = vunpack.c.l.b16 %v84
    %v416 = vunpack.c.h.b16 %v84
    %v417 = vunpack.c.l.b16 %v85
    %v418 = vunpack.c.h.b16 %v85
    %v419 = vunpack.c.l.b16 %v86
    %v420 = vunpack.c.h.b16 %v86
    %v421 = vunpack.c.l.b16 %v87
    %v422 = vunpack.c.h.b16 %v87
    %v423 = vunpack.c.l.b16 %v88
    %v424 = vunpack.c.h.b16 %v88
    %v425 = vunpack.c.l.b16 %v89
    %v426 = vunpack.c.h.b16 %v89
    %v427 = vunpack.c.l.b16 %v90
    %v428 = vunpack.c.h.b16 %v90
    %v429 = vunpack.c.l.b16 %v91
    %v430 = vunpack.c.h.b16 %v91
    %v431 = vunpack.c.l.b16 %v92
    %v432 = vunpack.c.h.b16 %v92
    %v433 = vunpack.c.l.b16 %v93
    %v434 = vunpack.c.h.b16 %v93
    %v435 = vunpack.c.l.b16 %v94
    %v436 = vunpack.c.h.b16 %v94
    %v437 = vunpack.c.l.b16 %v95
    %v438 = vunpack.c.h.b16 %v95
    %v439 = vunpack.c.l.b16 %v96
    %v440 = vunpack.c.h.b16 %v96
    %v441 = vunpack.c.l.b16 %v97
    %v442 = vunpack.c.h.b16 %v97
    %v443 = vunpack.c.l.b16 %v98
    %v444 = vunpack.c.h.b16 %v98
    %v445 = vunpack.c.l.b16 %v99
    %v446 = vunpack.c.h.b16 %v99
    %v447 = vunpack.c.l.b16 %v100
    %v448 = vunpack.c.h.b16 %v100
    %v449 = vunpack.c.l.b16 %v101
    %v450 = vunpack.c.h.b16 %v101
    %v451 = vunpack.c.l.b16 %v102
    %v452 = vunpack.c.h.b16 %v102
    %v453 = vunpack.c.l.b16 %v103
    %v454 = vunpack.c.h.b16 %v103
    %v455 = vunpack.c.l.b16 %v104
    %v456 = vunpack.c.h.b16 %v104
    %v457 = vunpack.c.l.b16 %v105
    %v458 = vunpack.c.h.b16 %v105
    %v459 = vunpack.c.l.b16 %v106
    %v460 = vunpack.c.h.b16 %v106
    %v461 = vunpack.c.l.b16 %v107
    %v462 = vunpack.c.h.b16 %v107
    %v463 = vunpack.c.l.b16 %v108
    %v464 = vunpack.c.h.b16 %v108
    %v465 = vunpack.c.l.b16 %v109
    %v466 = vunpack.c.h.b16 %v109
    %v467 = vunpack.c.l.b16 %v110
    %v468 = vunpack.c.h.b16 %v110
    %v469 = vunpack.c.l.b16 %v111
    %v470 = vunpack.c.h.b16 %v111
    %v471 = vunpack.c.l.b16 %v112
    %v472 = vunpack.c.h.b16 %v112
    %v473 = vunpack.c.l.b16 %v113
    %v474 = vunpack.c.h.b16 %v113
    %v475 = vunpack.c.l.b16 %v114
    %v476 = vunpack.c.h.b16 %v114
    %v477 = vunpack.c.l.b16 %v115
    %v478 = vunpack.c.h.b16 %v115
    %v479 = vunpack.c.l.b16 %v116
    %v480 = vunpack.c.h.b16 %v116
    %v481 = vunpack.c.l.b16 %v117
    %v482 = vunpack.c.h.b16 %v117
    %v483 = vunpack.c.l.b16 %v118
    %v484 = vunpack.c.h.b16 %v118
    %v485 = vunpack.c.l.b16 %v119
    %v486 = vunpack.c.h.b16 %v119
    %v487 = vunpack.c.l.b16 %v120
    %v488 = vunpack.c.h.b16 %v120
    %v489 = vunpack.c.l.b16 %v121
    %v490 = vunpack.c.h.b16 %v121
    %v491 = vunpack.c.l.b16 %v122
    %v492 = vunpack.c.h.b16 %v122
    %v493 = vunpack.c.l.b16 %v123
    %v494 = vunpack.c.h.b16 %v123
    %v495 = vunpack.c.l.b16 %v124
    %v496 = vunpack.c.h.b16 %v124
    %v497 = vunpack.c.l.b16 %v125
    %v498 = vunpack.c.h.b16 %v125
    %v499 = vunpack.c.l.b16 %v126
    %v500 = vunpack.c.h.b16 %v126
    %v501 = vunpack.c.l.b16 %v127
    %v502 = vunpack.c.h.b16 %v127
    %v503 = vunpack.c.l.b16 %v128
    %v504 = vunpack.c.h.b16 %v128
    %v505 = vunpack.c.l.b16 %v129
    %v506 = vunpack.c.h.b16 %v129
    %v507 = vunpack.c.l.b16 %v130
    %v508 = vunpack.c.h.b16 %v130
    %v509 = vunpack.c.l.b16 %v131
    %v510 = vunpack.c.h.b16 %v131
    %v511 = vunpack.c.l.b16 %v132
    %v512 = vunpack.c.h.b16 %v132
    %v513 = vunpack.c.l.b16 %v133
    %v514 = vunpack.c.h.b16 %v133
    %v515 = vunpack.c.l.b16 %v134
    %v516 = vunpack.c.h.b16 %v134
    %v517 = vunpack.c.l.b16 %v135
    %v518 = vunpack.c.h.b16 %v135
    %v519 = vunpack.c.l.b16 %v136
    %v520 = vunpack.c.h.b16 %v136
    %v521 = vunpack.c.l.b16 %v137
    %v522 = vunpack.c.h.b16 %v137
    %v523 = vunpack.c.l.b16 %v138
    %v524 = vunpack.c.h.b16 %v138
    %v525 = vunpack.c.l.b16 %v139
    %v526 = vunpack.c.h.b16 %v139
    %v527 = vunpack.c.l.b16 %v140
    %v528 = vunpack.c.h.b16 %v140
    %v529 = vunpack.c.l.b16 %v141
    %v530 = vunpack.c.h.b16 %v141
    %v531 = vunpack.c.l.b16 %v142
    %v532 = vunpack.c.h.b16 %v142
    %v533 = vunpack.c.l.b16 %v143
    %v534 = vunpack.c.h.b16 %v143
    %v535 = vunpack.c.l.b16 %v144
    %v536 = vunpack.c.h.b16 %v144
    %v537 = vunpack.c.l.b16 %v145
    %v538 = vunpack.c.h.b16 %v145
    %v539 = vunpack.c.l.b16 %v146
    %v540 = vunpack.c.h.b16 %v146
    %v541 = vunpack.c.l.b16 %v147
    %v542 = vunpack.c.h.b16 %v147
    %v543 = vunpack.c.l.b16 %v148
    %v544 = vunpack.c.h.b16 %v148
    %v545 = vunpack.c.l.b16 %v149
    %v546 = vunpack.c.h.b16 %v149
    %v547 = vunpack.c.l.b16 %v150
    %v548 = vunpack.c.h.b16 %v150
    %v549 = vunpack.c.l.b16 %v151
    %v550 = vunpack.c.h.b16 %v151
    %v551 = vunpack.c.l.b16 %v152
    %v552 = vunpack.c.h.b16 %v152
    %v553 = vunpack.c.l.b16 %v153
    %v554 = vunpack.c.h.b16 %v153
    %v555 = vunpack.c.l.b16 %v154
    %v556 = vunpack.c.h.b16 %v154
    %v557 = vunpack.c.l.b16 %v155
    %v558 = vunpack.c.h.b16 %v155
    %v559 = vunpack.c.l.b16 %v156
    %v560 = vunpack.c.h.b16 %v156
    %v561 = vunpack.c.l.b16 %v157
    %v562 = vunpack.c.h.b16 %v157
    %v563 = vunpack.c.l.b16 %v158
    %v564 = vunpack.c.h.b16 %v158
    %v565 = vunpack.c.l.b16 %v159
    %v566 = vunpack.c.h.b16 %v159
    %v567 = vunpack.c.l.b16 %v160
    %v568 = vunpack.c.h.b16 %v160
    %v569 = vunpack.c.l.b16 %v161
    %v570 = vunpack.c.h.b16 %v161
    %v571 = vunpack.c.l.b16 %v162
    %v572 = vunpack.c.h.b16 %v162
    %v573 = vunpack.c.l.b16 %v163
    %v574 = vunpack.c.h.b16 %v163
    %v575 = vunpack.c.l.b16 %v164
    %v576 = vunpack.c.h.b16 %v164
    %v577 = vunpack.c.l.b16 %v165
    %v578 = vunpack.c.h.b16 %v165
    %v579 = vunpack.c.l.b16 %v166
    %v580 = vunpack.c.h.b16 %v166
    %v581 = vunpack.c.l.b16 %v167
    %v582 = vunpack.c.h.b16 %v167
    %v583 = vunpack.c.l.b16 %v168
    %v584 = vunpack.c.h.b16 %v168
    %v585 = vunpack.c.l.b16 %v169
    %v586 = vunpack.c.h.b16 %v169
    %v587 = vunpack.c.l.b16 %v170
    %v588 = vunpack.c.h.b16 %v170
    %v589 = vunpack.c.l.b16 %v171
    %v590 = vunpack.c.h.b16 %v171
    %v591 = vunpack.c.l.b16 %v172
    %v592 = vunpack.c.h.b16 %v172
    %v593 = vunpack.c.l.b16 %v173
    %v594 = vunpack.c.h.b16 %v173
    %v595 = vunpack.c.l.b16 %v174
    %v596 = vunpack.c.h.b16 %v174
    %v597 = vunpack.c.l.b16 %v175
    %v598 = vunpack.c.h.b16 %v175
    %v599 = vunpack.c.l.b16 %v176
    %v600 = vunpack.c.h.b16 %v176
    %v601 = vpack.c.b16 %v347, %v345
    %v602 = vpack.c.b16 %v348, %v346
    %v603 = vpack.c.b16 %v351, %v349
    %v604 = vpack.c.b16 %v352, %v350
    %v605 = vpack.c.b16 %v355, %v353
    %v606 = vpack.c.b16 %v356, %v354
    %v607 = vpack.c.b16 %v359, %v357
    %v608 = vpack.c.b16 %v360, %v358
    %v609 = vpack.c.b16 %v363, %v361
    %v610 = vpack.c.b16 %v364, %v362
    %v611 = vpack.c.b16 %v367, %v365
    %v612 = vpack.c.b16 %v368, %v366
    %v613 = vpack.c.b16 %v371, %v369
    %v614 = vpack.c.b16 %v372, %v370
    %v615 = vpack.c.b16 %v375, %v373
    %v616 = vpack.c.b16 %v376, %v374
    %v617 = vpack.c.b16 %v379, %v377
    %v618 = vpack.c.b16 %v380, %v378
    %v619 = vpack.c.b16 %v383, %v381
    %v620 = vpack.c.b16 %v384, %v382
    %v621 = vpack.c.b16 %v387, %v385
    %v622 = vpack.c.b16 %v388, %v386
    %v623 = vpack.c.b16 %v391, %v389
    %v624 = vpack.c.b16 %v392, %v390
    %v625 = vpack.c.b16 %v395, %v393
    %v626 = vpack.c.b16 %v396, %v394
    %v627 = vpack.c.b16 %v399, %v397
    %v628 = vpack.c.b16 %v400, %v398
    %v629 = vpack.c.b16 %v403, %v401
    %v630 = vpack.c.b16 %v404, %v402
    %v631 = vpack.c.b16 %v407, %v405
    %v632 = vpack.c.b16 %v408, %v406
    %v633 = vpack.c.b16 %v411, %v409
    %v634 = vpack.c.b16 %v412, %v410
    %v635 = vpack.c.b16 %v415, %v413
    %v636 = vpack.c.b16 %v416, %v414
    %v637 = vpack.c.b16 %v419, %v417
    %v638 = vpack.c.b16 %v420, %v418
    %v639 = vpack.c.b16 %v423, %v421
    %v640 = vpack.c.b16 %v424, %v422
    %v641 = vpack.c.b16 %v427, %v425
    %v642 = vpack.c.b16 %v428, %v426
    %v643 = vpack.c.b16 %v431, %v429
    %v644 = vpack.c.b16 %v432, %v430
    %v645 = vpack.c.b16 %v435, %v433
    %v646 = vpack.c.b16 %v436, %v434
    %v647 = vpack.c.b16 %v439, %v437
    %v648 = vpack.c.b16 %v440, %v438
    %v649 = vpack.c.b16 %v443, %v441
    %v650 = vpack.c.b16 %v444, %v442
    %v651 = vpack.c.b16 %v447, %v445
    %v652 = vpack.c.b16 %v448, %v446
    %v653 = vpack.c.b16 %v451, %v449
    %v654 = vpack.c.b16 %v452, %v450
    %v655 = vpack.c.b16 %v455, %v453
    %v656 = vpack.c.b16 %v456, %v454
    %v657 = vpack.c.b16 %v459, %v457
    %v658 = vpack.c.b16 %v460, %v458
    %v659 = vpack.c.b16 %v463, %v461
    %v660 = vpack.c.b16 %v464, %v462
    %v661 = vpack.c.b16 %v467, %v465
    %v662 = vpack.c.b16 %v468, %v466
    %v663 = vpack.c.b16 %v471, %v469
    %v664 = vpack.c.b16 %v472, %v470
    %v665 = vpack.c.b16 %v475, %v473
    %v666 = vpack.c.b16 %v476, %v474
    %v667 = vpack.c.b16 %v479, %v477
    %v668 = vpack.c.b16 %v480, %v478
    %v669 = vpack.c.b16 %v483, %v481
    %v670 = vpack.c.b16 %v484, %v482
    %v671 = vpack.c.b16 %v487, %v485
    %v672 = vpack.c.b16 %v488, %v486
    %v673 = vpack.c.b16 %v491, %v489
    %v674 = vpack.c.b16 %v492, %v490
    %v675 = vpack.c.b16 %v495, %v493
    %v676 = vpack.c.b16 %v496, %v494
    %v677 = vpack.c.b16 %v499, %v497
    %v678 = vpack.c.b16 %v500, %v498
    %v679 = vpack.c.b16 %v503, %v501
    %v680 = vpack.c.b16 %v504, %v502
    %v681 = vpack.c.b16 %v507, %v505
    %v682 = vpack.c.b16 %v508, %v506
    %v683 = vpack.c.b16 %v511, %v509
    %v684 = vpack.c.b16 %v512, %v510
    %v685 = vpack.c.b16 %v515, %v513
    %v686 = vpack.c.b16 %v516, %v514
    %v687 = vpack.c.b16 %v519, %v517
    %v688 = vpack.c.b16 %v520, %v518
    %v689 = vpack.c.b16 %v523, %v521
    %v690 = vpack.c.b16 %v524, %v522
    %v691 = vpack.c.b16 %v527, %v525
    %v692 = vpack.c.b16 %v528, %v526
    %v693 = vpack.c.b16 %v531, %v529
    %v694 = vpack.c.b16 %v532, %v530
    %v695 = vpack.c.b16 %v535, %v533
    %v696 = vpack.c.b16 %v536, %v534
    %v697 = vpack.c.b16 %v539, %v537
    %v698 = vpack.c.b16 %v540, %v538
    %v699 = vpack.c.b16 %v543, %v541
    %v700 = vpack.c.b16 %v544, %v542
    %v701 = vpack.c.b16 %v547, %v545
    %v702 = vpack.c.b16 %v548, %v546
    %v703 = vpack.c.b16 %v551, %v549
    %v704 = vpack.c.b16 %v552, %v550
    %v705 = vpack.c.b16 %v555, %v553
    %v706 = vpack.c.b16 %v556, %v554
    %v707 = vpack.c.b16 %v559, %v557
    %v708 = vpack.c.b16 %v560, %v558
    %v709 = vpack.c.b16 %v563, %v561
    %v710 = vpack.c.b16 %v564, %v562
    %v711 = vpack.c.b16 %v567, %v565
    %v712 = vpack.c.b16 %v568, %v566
    %v713 = vpack.c.b16 %v571, %v569
    %v714 = vpack.c.b16 %v572, %v570
    %v715 = vpack.c.b16 %v575, %v573
    %v716 = vpack.c.b16 %v576, %v574
    %v717 = vpack.c.b16 %v579, %v577
    %v718 = vpack.c.b16 %v580, %v578
    %v719 = vpack.c.b16 %v583, %v581
    %v720 = vpack.c.b16 %v584, %v582
    %v721 = vpack.c.b16 %v587, %v585
    %v722 = vpack.c.b16 %v588, %v586
    %v723 = vpack.c.b16 %v591, %v589
    %v724 = vpack.c.b16 %v592, %v590
    %v725 = vpack.c.b16 %v595, %v593
    %v726 = vpack.c.b16 %v596, %v594
    %v727 = vpack.c.b16 %v599, %v597
    %v728 = vpack.c.b16 %v600, %v598
    %857 = vmatprep.subr.bf16.mxu0 %v616
    %858 = vmatpush1.bf16.msra.mxu0 %v615
    %859 = vmatprep.subr.bf16.mxu0 %v614
    %860 = vmatpush1.bf16.msra.mxu0 %v613
    %861 = vmatprep.subr.bf16.mxu0 %v612
    %862 = vmatpush1.bf16.msra.mxu0 %v611
    %863 = vmatprep.subr.bf16.mxu0 %v610
    %864 = vmatpush1.bf16.msra.mxu0 %v609
    %865 = vmatprep.subr.bf16.mxu0 %v608
    %866 = vmatpush1.bf16.msra.mxu0 %v607
    %867 = vmatprep.subr.bf16.mxu0 %v606
    %868 = vmatpush1.bf16.msra.mxu0 %v605
    %869 = vmatprep.subr.bf16.mxu0 %v604
    %870 = vmatpush1.bf16.msra.mxu0 %v603
    %871 = vmatprep.subr.bf16.mxu0 %v602
    %872 = vmatpush1.bf16.msra.mxu0 %v601
    %873 = vmatprep.subr.bf16.mxu0 %v632
    %874 = vmatpush2.bf16.msra.mxu0 %v631
    %875 = vmatprep.subr.bf16.mxu0 %v630
    %876 = vmatpush2.bf16.msra.mxu0 %v629
    %877 = vmatprep.subr.bf16.mxu0 %v628
    %878 = vmatpush2.bf16.msra.mxu0 %v627
    %879 = vmatprep.subr.bf16.mxu0 %v626
    %880 = vmatpush2.bf16.msra.mxu0 %v625
    %881 = vmatprep.subr.bf16.mxu0 %v624
    %882 = vmatpush2.bf16.msra.mxu0 %v623
    %883 = vmatprep.subr.bf16.mxu0 %v622
    %884 = vmatpush2.bf16.msra.mxu0 %v621
    %885 = vmatprep.subr.bf16.mxu0 %v620
    %886 = vmatpush2.bf16.msra.mxu0 %v619
    %887 = vmatprep.subr.bf16.mxu0 %v618
    %888 = vmatpush2.bf16.msra.mxu0 %v617
    %889 = vmatprep.mubr.bf16.mxu0 %v202
    %890 = vmatmul.mubr.bf16.gmra.mxu0 %v201
    %v891 = vpop.f32.mrf.mxu0
    %v892 = vadd.f32 %v182, %v891
    %v893 = vpop.f32.mrf.mxu0
    %v894 = vadd.f32 %v186, %v893
    %v895 = vpop.f32.mrf.mxu0
    %v896 = vpop.f32.mrf.mxu0
    %897 = vdwg.mxu0
    %898 = vmatprep.subr.bf16.mxu0 %v648
    %899 = vmatpush1.bf16.msra.mxu0 %v647
    %900 = vmatprep.subr.bf16.mxu0 %v646
    %901 = vmatpush1.bf16.msra.mxu0 %v645
    %902 = vmatprep.subr.bf16.mxu0 %v644
    %903 = vmatpush1.bf16.msra.mxu0 %v643
    %904 = vmatprep.subr.bf16.mxu0 %v642
    %905 = vmatpush1.bf16.msra.mxu0 %v641
    %906 = vmatprep.subr.bf16.mxu0 %v640
    %907 = vmatpush1.bf16.msra.mxu0 %v639
    %908 = vmatprep.subr.bf16.mxu0 %v638
    %909 = vmatpush1.bf16.msra.mxu0 %v637
    %910 = vmatprep.subr.bf16.mxu0 %v636
    %911 = vmatpush1.bf16.msra.mxu0 %v635
    %912 = vmatprep.subr.bf16.mxu0 %v634
    %913 = vmatpush1.bf16.msra.mxu0 %v633
    %914 = vmatprep.subr.bf16.mxu0 %v664
    %915 = vmatpush2.bf16.msra.mxu0 %v663
    %916 = vmatprep.subr.bf16.mxu0 %v662
    %917 = vmatpush2.bf16.msra.mxu0 %v661
    %918 = vmatprep.subr.bf16.mxu0 %v660
    %919 = vmatpush2.bf16.msra.mxu0 %v659
    %920 = vmatprep.subr.bf16.mxu0 %v658
    %921 = vmatpush2.bf16.msra.mxu0 %v657
    %922 = vmatprep.subr.bf16.mxu0 %v656
    %923 = vmatpush2.bf16.msra.mxu0 %v655
    %924 = vmatprep.subr.bf16.mxu0 %v654
    %925 = vmatpush2.bf16.msra.mxu0 %v653
    %926 = vmatprep.subr.bf16.mxu0 %v652
    %927 = vmatpush2.bf16.msra.mxu0 %v651
    %928 = vmatprep.subr.bf16.mxu0 %v650
    %929 = vmatpush2.bf16.msra.mxu0 %v649
    %930 = vmatprep.mubr.bf16.mxu0 %v204
    %931 = vmatmul.mubr.bf16.gmra.mxu0 %v203
    %v932 = vpop.f32.mrf.mxu0
    %v933 = vadd.f32 %v892, %v932
    %v934 = vpop.f32.mrf.mxu0
    %v935 = vadd.f32 %v894, %v934
    %v936 = vpop.f32.mrf.mxu0
    %v937 = vpop.f32.mrf.mxu0
    %938 = vdwg.mxu0
    %939 = vmatprep.subr.bf16.mxu0 %v680
    %940 = vmatpush1.bf16.msra.mxu0 %v679
    %941 = vmatprep.subr.bf16.mxu0 %v678
    %942 = vmatpush1.bf16.msra.mxu0 %v677
    %943 = vmatprep.subr.bf16.mxu0 %v676
    %944 = vmatpush1.bf16.msra.mxu0 %v675
    %945 = vmatprep.subr.bf16.mxu0 %v674
    %946 = vmatpush1.bf16.msra.mxu0 %v673
    %947 = vmatprep.subr.bf16.mxu0 %v672
    %948 = vmatpush1.bf16.msra.mxu0 %v671
    %949 = vmatprep.subr.bf16.mxu0 %v670
    %950 = vmatpush1.bf16.msra.mxu0 %v669
    %951 = vmatprep.subr.bf16.mxu0 %v668
    %952 = vmatpush1.bf16.msra.mxu0 %v667
    %953 = vmatprep.subr.bf16.mxu0 %v666
    %954 = vmatpush1.bf16.msra.mxu0 %v665
    %955 = vmatprep.subr.bf16.mxu0 %v696
    %956 = vmatpush2.bf16.msra.mxu0 %v695
    %957 = vmatprep.subr.bf16.mxu0 %v694
    %958 = vmatpush2.bf16.msra.mxu0 %v693
    %959 = vmatprep.subr.bf16.mxu0 %v692
    %960 = vmatpush2.bf16.msra.mxu0 %v691
    %961 = vmatprep.subr.bf16.mxu0 %v690
    %962 = vmatpush2.bf16.msra.mxu0 %v689
    %963 = vmatprep.subr.bf16.mxu0 %v688
    %964 = vmatpush2.bf16.msra.mxu0 %v687
    %965 = vmatprep.subr.bf16.mxu0 %v686
    %966 = vmatpush2.bf16.msra.mxu0 %v685
    %967 = vmatprep.subr.bf16.mxu0 %v684
    %968 = vmatpush2.bf16.msra.mxu0 %v683
    %969 = vmatprep.subr.bf16.mxu0 %v682
    %970 = vmatpush2.bf16.msra.mxu0 %v681
    %971 = vmatprep.mubr.bf16.mxu0 %v206
    %972 = vmatmul.mubr.bf16.gmra.mxu0 %v205
    %v973 = vpop.f32.mrf.mxu0
    %v974 = vadd.f32 %v933, %v973
    %v975 = vpop.f32.mrf.mxu0
    %v976 = vadd.f32 %v935, %v975
    %v977 = vpop.f32.mrf.mxu0
    %v978 = vpop.f32.mrf.mxu0
    %979 = vdwg.mxu0
    %980 = vmatprep.subr.bf16.mxu0 %v712
    %981 = vmatpush1.bf16.msra.mxu0 %v711
    %982 = vmatprep.subr.bf16.mxu0 %v710
    %983 = vmatpush1.bf16.msra.mxu0 %v709
    %984 = vmatprep.subr.bf16.mxu0 %v708
    %985 = vmatpush1.bf16.msra.mxu0 %v707
    %986 = vmatprep.subr.bf16.mxu0 %v706
    %987 = vmatpush1.bf16.msra.mxu0 %v705
    %988 = vmatprep.subr.bf16.mxu0 %v704
    %989 = vmatpush1.bf16.msra.mxu0 %v703
    %990 = vmatprep.subr.bf16.mxu0 %v702
    %991 = vmatpush1.bf16.msra.mxu0 %v701
    %992 = vmatprep.subr.bf16.mxu0 %v700
    %993 = vmatpush1.bf16.msra.mxu0 %v699
    %994 = vmatprep.subr.bf16.mxu0 %v698
    %995 = vmatpush1.bf16.msra.mxu0 %v697
    %996 = vmatprep.subr.bf16.mxu0 %v728
    %997 = vmatpush2.bf16.msra.mxu0 %v727
    %998 = vmatprep.subr.bf16.mxu0 %v726
    %999 = vmatpush2.bf16.msra.mxu0 %v725
    %1000 = vmatprep.subr.bf16.mxu0 %v724
    %1001 = vmatpush2.bf16.msra.mxu0 %v723
    %1002 = vmatprep.subr.bf16.mxu0 %v722
    %1003 = vmatpush2.bf16.msra.mxu0 %v721
    %1004 = vmatprep.subr.bf16.mxu0 %v720
    %1005 = vmatpush2.bf16.msra.mxu0 %v719
    %1006 = vmatprep.subr.bf16.mxu0 %v718
    %1007 = vmatpush2.bf16.msra.mxu0 %v717
    %1008 = vmatprep.subr.bf16.mxu0 %v716
    %1009 = vmatpush2.bf16.msra.mxu0 %v715
    %1010 = vmatprep.subr.bf16.mxu0 %v714
    %1011 = vmatpush2.bf16.msra.mxu0 %v713
    %1012 = vmatprep.mubr.bf16.mxu0 %v208
    %1013 = vmatmul.mubr.bf16.gmra.mxu0 %v207
    %v1014 = vpop.f32.mrf.mxu0
    %v1015 = vadd.f32 %v974, %v1014
    %v1016 = vpop.f32.mrf.mxu0
    %v1017 = vadd.f32 %v976, %v1016
    %v1018 = vpop.f32.mrf.mxu0
    %v1019 = vpop.f32.mrf.mxu0
    %1020 = vdwg.mxu0
    %vm1021 = vcmp.gt.f32.partialorder %v1015, 0.0
    %vm1022 = vcmp.gt.f32.partialorder %v1017, 0.0
    %v1023 = vstv %s43
    %v1024 = vmul.f32 %v1023, %v1015
    %v1025 = vmul.f32 %v1023, %v1017
    %v1026 = vsel %vm1021, %v1015, %v1024
    %v1027 = vsel %vm1022, %v1017, %v1025
    %v1028 = vpack.c.bf16 %v1026, %v1026
    %v1029 = vpack.c.bf16 %v1027, %v1027
    %v1030 = vld [vmem:[%s4] sm:$0xff]
    %v1031 = vld [vmem:[%s4 + $0x8] sm:$0xff]
    %v1032 = vld [vmem:[%s4 + $0x10] sm:$0xff]
    %v1033 = vld [vmem:[%s4 + $0x18] sm:$0xff]
    %v1034 = vld [vmem:[%s4 + $0x20] sm:$0xff]
    %v1035 = vld [vmem:[%s4 + $0x28] sm:$0xff]
    %v1036 = vld [vmem:[%s4 + $0x30] sm:$0xff]
    %v1037 = vld [vmem:[%s4 + $0x38] sm:$0xff]
    %v1038 = vld [vmem:[%s4 + $0x40] sm:$0xff]
    %v1039 = vld [vmem:[%s4 + $0x48] sm:$0xff]
    %v1040 = vld [vmem:[%s4 + $0x50] sm:$0xff]
    %v1041 = vld [vmem:[%s4 + $0x58] sm:$0xff]
    %v1042 = vld [vmem:[%s4 + $0x60] sm:$0xff]
    %v1043 = vld [vmem:[%s4 + $0x68] sm:$0xff]
    %v1044 = vld [vmem:[%s4 + $0x70] sm:$0xff]
    %v1045 = vld [vmem:[%s4 + $0x78] sm:$0xff]
    %v1046 = vld [vmem:[%s4 + $0x80] sm:$0xff]
    %v1047 = vld [vmem:[%s4 + $0x88] sm:$0xff]
    %v1048 = vld [vmem:[%s4 + $0x90] sm:$0xff]
    %v1049 = vld [vmem:[%s4 + $0x98] sm:$0xff]
    %v1050 = vld [vmem:[%s4 + $0xa0] sm:$0xff]
    %v1051 = vld [vmem:[%s4 + $0xa8] sm:$0xff]
    %v1052 = vld [vmem:[%s4 + $0xb0] sm:$0xff]
    %v1053 = vld [vmem:[%s4 + $0xb8] sm:$0xff]
    %v1054 = vld [vmem:[%s4 + $0xc0] sm:$0xff]
    %v1055 = vld [vmem:[%s4 + $0xc8] sm:$0xff]
    %v1056 = vld [vmem:[%s4 + $0xd0] sm:$0xff]
    %v1057 = vld [vmem:[%s4 + $0xd8] sm:$0xff]
    %v1058 = vld [vmem:[%s4 + $0xe0] sm:$0xff]
    %v1059 = vld [vmem:[%s4 + $0xe8] sm:$0xff]
    %v1060 = vld [vmem:[%s4 + $0xf0] sm:$0xff]
    %v1061 = vld [vmem:[%s4 + $0xf8] sm:$0xff]
    %v1062 = vld [vmem:[%s5] sm:$0x3]
    %v1064 = vlaneseq
    %v1065 = vshrl.u32 %v1064, 7
    %v1066 = vsub.s32 0, %v1065
    %v1067 = vrot.slane %v1062, %v1066
    %v1068 = vlaneseq
    %v1069 = vshrl.u32 %v1068, 7
    %v1070 = vsub.s32 1, %v1069
    %v1071 = vrot.slane %v1062, %v1070
    %v1106 = vunpack.c.l.b16 %v1030
    %v1107 = vunpack.c.h.b16 %v1030
    %v1108 = vunpack.c.l.b16 %v1031
    %v1109 = vunpack.c.h.b16 %v1031
    %v1110 = vunpack.c.l.b16 %v1032
    %v1111 = vunpack.c.h.b16 %v1032
    %v1112 = vunpack.c.l.b16 %v1033
    %v1113 = vunpack.c.h.b16 %v1033
    %v1114 = vunpack.c.l.b16 %v1034
    %v1115 = vunpack.c.h.b16 %v1034
    %v1116 = vunpack.c.l.b16 %v1035
    %v1117 = vunpack.c.h.b16 %v1035
    %v1118 = vunpack.c.l.b16 %v1036
    %v1119 = vunpack.c.h.b16 %v1036
    %v1120 = vunpack.c.l.b16 %v1037
    %v1121 = vunpack.c.h.b16 %v1037
    %v1122 = vunpack.c.l.b16 %v1038
    %v1123 = vunpack.c.h.b16 %v1038
    %v1124 = vunpack.c.l.b16 %v1039
    %v1125 = vunpack.c.h.b16 %v1039
    %v1126 = vunpack.c.l.b16 %v1040
    %v1127 = vunpack.c.h.b16 %v1040
    %v1128 = vunpack.c.l.b16 %v1041
    %v1129 = vunpack.c.h.b16 %v1041
    %v1130 = vunpack.c.l.b16 %v1042
    %v1131 = vunpack.c.h.b16 %v1042
    %v1132 = vunpack.c.l.b16 %v1043
    %v1133 = vunpack.c.h.b16 %v1043
    %v1134 = vunpack.c.l.b16 %v1044
    %v1135 = vunpack.c.h.b16 %v1044
    %v1136 = vunpack.c.l.b16 %v1045
    %v1137 = vunpack.c.h.b16 %v1045
    %v1138 = vunpack.c.l.b16 %v1046
    %v1139 = vunpack.c.h.b16 %v1046
    %v1140 = vunpack.c.l.b16 %v1047
    %v1141 = vunpack.c.h.b16 %v1047
    %v1142 = vunpack.c.l.b16 %v1048
    %v1143 = vunpack.c.h.b16 %v1048
    %v1144 = vunpack.c.l.b16 %v1049
    %v1145 = vunpack.c.h.b16 %v1049
    %v1146 = vunpack.c.l.b16 %v1050
    %v1147 = vunpack.c.h.b16 %v1050
    %v1148 = vunpack.c.l.b16 %v1051
    %v1149 = vunpack.c.h.b16 %v1051
    %v1150 = vunpack.c.l.b16 %v1052
    %v1151 = vunpack.c.h.b16 %v1052
    %v1152 = vunpack.c.l.b16 %v1053
    %v1153 = vunpack.c.h.b16 %v1053
    %v1154 = vunpack.c.l.b16 %v1054
    %v1155 = vunpack.c.h.b16 %v1054
    %v1156 = vunpack.c.l.b16 %v1055
    %v1157 = vunpack.c.h.b16 %v1055
    %v1158 = vunpack.c.l.b16 %v1056
    %v1159 = vunpack.c.h.b16 %v1056
    %v1160 = vunpack.c.l.b16 %v1057
    %v1161 = vunpack.c.h.b16 %v1057
    %v1162 = vunpack.c.l.b16 %v1058
    %v1163 = vunpack.c.h.b16 %v1058
    %v1164 = vunpack.c.l.b16 %v1059
    %v1165 = vunpack.c.h.b16 %v1059
    %v1166 = vunpack.c.l.b16 %v1060
    %v1167 = vunpack.c.h.b16 %v1060
    %v1168 = vunpack.c.l.b16 %v1061
    %v1169 = vunpack.c.h.b16 %v1061
    %v1170 = vpack.c.b16 %v1108, %v1106
    %v1171 = vpack.c.b16 %v1109, %v1107
    %v1172 = vpack.c.b16 %v1112, %v1110
    %v1173 = vpack.c.b16 %v1113, %v1111
    %v1174 = vpack.c.b16 %v1116, %v1114
    %v1175 = vpack.c.b16 %v1117, %v1115
    %v1176 = vpack.c.b16 %v1120, %v1118
    %v1177 = vpack.c.b16 %v1121, %v1119
    %v1178 = vpack.c.b16 %v1124, %v1122
    %v1179 = vpack.c.b16 %v1125, %v1123
    %v1180 = vpack.c.b16 %v1128, %v1126
    %v1181 = vpack.c.b16 %v1129, %v1127
    %v1182 = vpack.c.b16 %v1132, %v1130
    %v1183 = vpack.c.b16 %v1133, %v1131
    %v1184 = vpack.c.b16 %v1136, %v1134
    %v1185 = vpack.c.b16 %v1137, %v1135
    %v1186 = vpack.c.b16 %v1140, %v1138
    %v1187 = vpack.c.b16 %v1141, %v1139
    %v1188 = vpack.c.b16 %v1144, %v1142
    %v1189 = vpack.c.b16 %v1145, %v1143
    %v1190 = vpack.c.b16 %v1148, %v1146
    %v1191 = vpack.c.b16 %v1149, %v1147
    %v1192 = vpack.c.b16 %v1152, %v1150
    %v1193 = vpack.c.b16 %v1153, %v1151
    %v1194 = vpack.c.b16 %v1156, %v1154
    %v1195 = vpack.c.b16 %v1157, %v1155
    %v1196 = vpack.c.b16 %v1160, %v1158
    %v1197 = vpack.c.b16 %v1161, %v1159
    %v1198 = vpack.c.b16 %v1164, %v1162
    %v1199 = vpack.c.b16 %v1165, %v1163
    %v1200 = vpack.c.b16 %v1168, %v1166
    %v1201 = vpack.c.b16 %v1169, %v1167
    %1234 = vmatprep.subr.bf16.mxu0 %v1185
    %1235 = vmatpush1.bf16.msra.mxu0 %v1184
    %1236 = vmatprep.subr.bf16.mxu0 %v1183
    %1237 = vmatpush1.bf16.msra.mxu0 %v1182
    %1238 = vmatprep.subr.bf16.mxu0 %v1181
    %1239 = vmatpush1.bf16.msra.mxu0 %v1180
    %1240 = vmatprep.subr.bf16.mxu0 %v1179
    %1241 = vmatpush1.bf16.msra.mxu0 %v1178
    %1242 = vmatprep.subr.bf16.mxu0 %v1177
    %1243 = vmatpush1.bf16.msra.mxu0 %v1176
    %1244 = vmatprep.subr.bf16.mxu0 %v1175
    %1245 = vmatpush1.bf16.msra.mxu0 %v1174
    %1246 = vmatprep.subr.bf16.mxu0 %v1173
    %1247 = vmatpush1.bf16.msra.mxu0 %v1172
    %1248 = vmatprep.subr.bf16.mxu0 %v1171
    %1249 = vmatpush1.bf16.msra.mxu0 %v1170
    %1250 = vmatprep.subr.bf16.mxu0 %v1201
    %1251 = vmatpush2.bf16.msra.mxu0 %v1200
    %1252 = vmatprep.subr.bf16.mxu0 %v1199
    %1253 = vmatpush2.bf16.msra.mxu0 %v1198
    %1254 = vmatprep.subr.bf16.mxu0 %v1197
    %1255 = vmatpush2.bf16.msra.mxu0 %v1196
    %1256 = vmatprep.subr.bf16.mxu0 %v1195
    %1257 = vmatpush2.bf16.msra.mxu0 %v1194
    %1258 = vmatprep.subr.bf16.mxu0 %v1193
    %1259 = vmatpush2.bf16.msra.mxu0 %v1192
    %1260 = vmatprep.subr.bf16.mxu0 %v1191
    %1261 = vmatpush2.bf16.msra.mxu0 %v1190
    %1262 = vmatprep.subr.bf16.mxu0 %v1189
    %1263 = vmatpush2.bf16.msra.mxu0 %v1188
    %1264 = vmatprep.subr.bf16.mxu0 %v1187
    %1265 = vmatpush2.bf16.msra.mxu0 %v1186
    %1266 = vmatprep.mubr.bf16.mxu0 %v1029
    %1267 = vmatmul.mubr.bf16.gmra.mxu0 %v1028
    %v1268 = vpop.f32.mrf.mxu0
    %v1269 = vadd.f32 %v1067, %v1268
    %v1270 = vpop.f32.mrf.mxu0
    %v1271 = vadd.f32 %v1071, %v1270
    %v1272 = vpop.f32.mrf.mxu0
    %v1273 = vpop.f32.mrf.mxu0
    %1274 = vdwg.mxu0
    %vm1275 = vcmp.gt.f32.partialorder %v1269, 0.0
    %vm1276 = vcmp.gt.f32.partialorder %v1271, 0.0
    %v1277 = vstv %s44
    %v1278 = vmul.f32 %v1277, %v1269
    %v1279 = vmul.f32 %v1277, %v1271
    %v1280 = vsel %vm1275, %v1269, %v1278
    %v1281 = vsel %vm1276, %v1271, %v1279
    %v1282 = vpack.c.bf16 %v1280, %v1280
    %v1283 = vpack.c.bf16 %v1281, %v1281
    %v1284 = vld [vmem:[%s6] sm:$0xf]
    %v1285 = vld [vmem:[%s6 + $0x4] sm:$0xf]
    %v1286 = vld [vmem:[%s6 + $0x8] sm:$0xf]
    %v1287 = vld [vmem:[%s6 + $0xc] sm:$0xf]
    %v1288 = vld [vmem:[%s6 + $0x10] sm:$0xf]
    %v1289 = vld [vmem:[%s6 + $0x14] sm:$0xf]
    %v1290 = vld [vmem:[%s6 + $0x18] sm:$0xf]
    %v1291 = vld [vmem:[%s6 + $0x1c] sm:$0xf]
    %v1292 = vld [vmem:[%s6 + $0x20] sm:$0xf]
    %v1293 = vld [vmem:[%s6 + $0x24] sm:$0xf]
    %v1294 = vld [vmem:[%s6 + $0x28] sm:$0xf]
    %v1295 = vld [vmem:[%s6 + $0x2c] sm:$0xf]
    %v1296 = vld [vmem:[%s6 + $0x30] sm:$0xf]
    %v1297 = vld [vmem:[%s6 + $0x34] sm:$0xf]
    %v1298 = vld [vmem:[%s6 + $0x38] sm:$0xf]
    %v1299 = vld [vmem:[%s6 + $0x3c] sm:$0xf]
    %v1300 = vld [vmem:[%s6 + $0x40] sm:$0xf]
    %v1301 = vld [vmem:[%s6 + $0x44] sm:$0xf]
    %v1302 = vld [vmem:[%s6 + $0x48] sm:$0xf]
    %v1303 = vld [vmem:[%s6 + $0x4c] sm:$0xf]
    %v1304 = vld [vmem:[%s6 + $0x50] sm:$0xf]
    %v1305 = vld [vmem:[%s6 + $0x54] sm:$0xf]
    %v1306 = vld [vmem:[%s6 + $0x58] sm:$0xf]
    %v1307 = vld [vmem:[%s6 + $0x5c] sm:$0xf]
    %v1308 = vld [vmem:[%s6 + $0x60] sm:$0xf]
    %v1309 = vld [vmem:[%s6 + $0x64] sm:$0xf]
    %v1310 = vld [vmem:[%s6 + $0x68] sm:$0xf]
    %v1311 = vld [vmem:[%s6 + $0x6c] sm:$0xf]
    %v1312 = vld [vmem:[%s6 + $0x70] sm:$0xf]
    %v1313 = vld [vmem:[%s6 + $0x74] sm:$0xf]
    %v1314 = vld [vmem:[%s6 + $0x78] sm:$0xf]
    %v1315 = vld [vmem:[%s6 + $0x7c] sm:$0xf]
    %v1316 = vld [vmem:[%s7] sm:$0x1]
    %v1318 = vlaneseq
    %v1319 = vshrl.u32 %v1318, 7
    %v1320 = vsub.s32 0, %v1319
    %v1321 = vrot.slane %v1316, %v1320
    %v1355 = vunpack.c.l.b16 %v1284
    %v1356 = vunpack.c.l.b16 %v1285
    %v1357 = vunpack.c.l.b16 %v1286
    %v1358 = vunpack.c.l.b16 %v1287
    %v1359 = vunpack.c.l.b16 %v1288
    %v1360 = vunpack.c.l.b16 %v1289
    %v1361 = vunpack.c.l.b16 %v1290
    %v1362 = vunpack.c.l.b16 %v1291
    %v1363 = vunpack.c.l.b16 %v1292
    %v1364 = vunpack.c.l.b16 %v1293
    %v1365 = vunpack.c.l.b16 %v1294
    %v1366 = vunpack.c.l.b16 %v1295
    %v1367 = vunpack.c.l.b16 %v1296
    %v1368 = vunpack.c.l.b16 %v1297
    %v1369 = vunpack.c.l.b16 %v1298
    %v1370 = vunpack.c.l.b16 %v1299
    %v1371 = vunpack.c.l.b16 %v1300
    %v1372 = vunpack.c.l.b16 %v1301
    %v1373 = vunpack.c.l.b16 %v1302
    %v1374 = vunpack.c.l.b16 %v1303
    %v1375 = vunpack.c.l.b16 %v1304
    %v1376 = vunpack.c.l.b16 %v1305
    %v1377 = vunpack.c.l.b16 %v1306
    %v1378 = vunpack.c.l.b16 %v1307
    %v1379 = vunpack.c.l.b16 %v1308
    %v1380 = vunpack.c.l.b16 %v1309
    %v1381 = vunpack.c.l.b16 %v1310
    %v1382 = vunpack.c.l.b16 %v1311
    %v1383 = vunpack.c.l.b16 %v1312
    %v1384 = vunpack.c.l.b16 %v1313
    %v1385 = vunpack.c.l.b16 %v1314
    %v1386 = vunpack.c.l.b16 %v1315
    %v1387 = vpack.c.b16 %v1356, %v1355
    %v1388 = vpack.c.b16 %v1358, %v1357
    %v1389 = vpack.c.b16 %v1360, %v1359
    %v1390 = vpack.c.b16 %v1362, %v1361
    %v1391 = vpack.c.b16 %v1364, %v1363
    %v1392 = vpack.c.b16 %v1366, %v1365
    %v1393 = vpack.c.b16 %v1368, %v1367
    %v1394 = vpack.c.b16 %v1370, %v1369
    %v1395 = vpack.c.b16 %v1372, %v1371
    %v1396 = vpack.c.b16 %v1374, %v1373
    %v1397 = vpack.c.b16 %v1376, %v1375
    %v1398 = vpack.c.b16 %v1378, %v1377
    %v1399 = vpack.c.b16 %v1380, %v1379
    %v1400 = vpack.c.b16 %v1382, %v1381
    %v1401 = vpack.c.b16 %v1384, %v1383
    %v1402 = vpack.c.b16 %v1386, %v1385
    %1419 = vmatprep.subr.bf16.mxu0 0
    %1420 = vmatpush1.bf16.msra.mxu0 %v1394
    %1421 = vmatprep.subr.bf16.mxu0 0
    %1422 = vmatpush1.bf16.msra.mxu0 %v1393
    %1423 = vmatprep.subr.bf16.mxu0 0
    %1424 = vmatpush1.bf16.msra.mxu0 %v1392
    %1425 = vmatprep.subr.bf16.mxu0 0
    %1426 = vmatpush1.bf16.msra.mxu0 %v1391
    %1427 = vmatprep.subr.bf16.mxu0 0
    %1428 = vmatpush1.bf16.msra.mxu0 %v1390
    %1429 = vmatprep.subr.bf16.mxu0 0
    %1430 = vmatpush1.bf16.msra.mxu0 %v1389
    %1431 = vmatprep.subr.bf16.mxu0 0
    %1432 = vmatpush1.bf16.msra.mxu0 %v1388
    %1433 = vmatprep.subr.bf16.mxu0 0
    %1434 = vmatpush1.bf16.msra.mxu0 %v1387
    %1435 = vmatprep.subr.bf16.mxu0 0
    %1436 = vmatpush2.bf16.msra.mxu0 %v1402
    %1437 = vmatprep.subr.bf16.mxu0 0
    %1438 = vmatpush2.bf16.msra.mxu0 %v1401
    %1439 = vmatprep.subr.bf16.mxu0 0
    %1440 = vmatpush2.bf16.msra.mxu0 %v1400
    %1441 = vmatprep.subr.bf16.mxu0 0
    %1442 = vmatpush2.bf16.msra.mxu0 %v1399
    %1443 = vmatprep.subr.bf16.mxu0 0
    %1444 = vmatpush2.bf16.msra.mxu0 %v1398
    %1445 = vmatprep.subr.bf16.mxu0 0
    %1446 = vmatpush2.bf16.msra.mxu0 %v1397
    %1447 = vmatprep.subr.bf16.mxu0 0
    %1448 = vmatpush2.bf16.msra.mxu0 %v1396
    %1449 = vmatprep.subr.bf16.mxu0 0
    %1450 = vmatpush2.bf16.msra.mxu0 %v1395
    %1451 = vmatprep.mubr.bf16.mxu0 %v1283
    %1452 = vmatmul.mubr.bf16.gmra.mxu0 %v1282
    %v1453 = vpop.f32.mrf.mxu0
    %v1454 = vadd.f32 %v1321, %v1453
    %v1455 = vpop.f32.mrf.mxu0
    %v1456 = vpop.f32.mrf.mxu0
    %v1457 = vpop.f32.mrf.mxu0
    %1458 = vdwg.mxu0
    %vm1459 = vcmask 80896
    %1460 = vst.msk [vmem:[%s8] sm:$0xff] %vm1459, %v1454
    // Predicated region
    $region38: #{embedding_net_l2.6} parent=1 // pred_check
      _
    $region39: #{embedding_net_l2.6} parent=1 // pred_check_branch
      %1462 = sbr.rel (0) target = $region41
    $region40: #{embedding_net_l2.6} parent=1 // pred_region
      _
    $region41: #{embedding_net_l2.6} parent=1 // pred_fallthru
      _
    // Predicated region
    $region42: #{embedding_net_l2.6} parent=1 // pred_check
      _
    $region43: #{embedding_net_l2.6} parent=1 // pred_check_branch
      %1464 = sbr.rel (0) target = $region45
    $region44: #{embedding_net_l2.6} parent=1 // pred_region
      _
    $region45: #{embedding_net_l2.6} parent=1 // pred_fallthru
      _
    %1465 = vsyncpa [#allocation3], 1

// kernel: embedding_net_l2.7
$region0: #{embedding_net_l2.7}
  #allocation0 [shape = 'u32[]', space=smem, size = 0x4, offset = 0x4, fixed_abs, tag = 'smem constant byte address 0x4 - core index']
  #allocation1 [shape = 'u32[144,128]{1,0:T(1,128)}', space=vmem, size = 0x12000, scoped, tag = 'internal scratch']
  %s0 = inlined_call_operand.vmem [shape: f32[2,10], index: 0, kind: input, shape index: {}]
  %s1 = inlined_call_operand.vmem [shape: f32[1,10], index: 1, kind: input, shape index: {}]
  %s2 = inlined_call_operand.vmem [shape: f32[1,10], index: 2, kind: input, shape index: {}]
  %s3 = inlined_call_operand.hbm [shape: f32[2,10], index: 3, kind: output, shape index: {}]
  %s4 = sld [smem:[#allocation0]]
  $region22: #{embedding_net_l2.7} parent=0
    _
  %s6 = ssub.s32 1, %s4
  %s7 = scalar_select 0, %s6, %s4
  $region1: #{embedding_net_l2.7} parent=0
    #allocation2 [shape = 'u8[1024]{0}', space=vmem, size = 0x400, scoped, tag = 'output window, operand 0, single buffered']
    #allocation3 [shape = 's32[1]{0}', space=sflag, size = 0x4, scoped, tag = 'scoped memory for embedding_net_l2.7']
    %8 = vsyncpa [#allocation3], 0
    // Predicated region
    $region2: #{embedding_net_l2.7} parent=1 // pred_check
      _
    $region3: #{embedding_net_l2.7} parent=1 // pred_check_branch
      %10 = sbr.rel (0) target = $region5
    $region4: #{embedding_net_l2.7} parent=1 // pred_region
      _
    $region5: #{embedding_net_l2.7} parent=1 // pred_fallthru
      _
    // Predicated region
    $region6: #{embedding_net_l2.7} parent=1 // pred_check
      _
    $region7: #{embedding_net_l2.7} parent=1 // pred_check_branch
      %12 = sbr.rel (0) target = $region9
    $region8: #{embedding_net_l2.7} parent=1 // pred_region
      _
    $region9: #{embedding_net_l2.7} parent=1 // pred_fallthru
      _
    // Predicated region
    $region10: #{embedding_net_l2.7} parent=1 // pred_check
      _
    $region11: #{embedding_net_l2.7} parent=1 // pred_check_branch
      %14 = sbr.rel (0) target = $region13
    $region12: #{embedding_net_l2.7} parent=1 // pred_region
      _
    $region13: #{embedding_net_l2.7} parent=1 // pred_fallthru
      _
    %v15 = vld [vmem:[%s0] sm:$0x3]
    %vm16 = vcmask 74752
    %v17 = vsel %vm16, %v15, 0.0
    %v18 = vrot.slane %v17, 4
    %v19 = vadd.f32 %v17, %v18
    %v20 = vrot.slane %v19, 2
    %v21 = vadd.f32 %v19, %v20
    %v22 = vrot.slane %v21, 1
    %v23 = vadd.f32 %v21, %v22
    %v24 = vrcp.pop 2.0
    %v25 = vmul.f32 %v23, %v24
    %v26 = vsub.f32 %v15, %v25
    %v27 = vmul.f32 %v26, %v26
    %v28 = vsel %vm16, %v27, 0.0
    %v29 = vrot.slane %v28, 4
    %v30 = vadd.f32 %v28, %v29
    %v31 = vrot.slane %v30, 2
    %v32 = vadd.f32 %v30, %v31
    %v33 = vrot.slane %v32, 1
    %v34 = vadd.f32 %v32, %v33
    %v35 = vmul.f32 %v34, %v24
    %v36 = vadd.f32 %v35, 1e-05
    %v37 = vrsqrt.pop %v36
    %v38 = vmul.f32 %v26, %v37
    %v39 = vld [vmem:[%s1] sm:$0x1]
    %v41 = vlaneseq
    %v42 = vshrl.u32 %v41, 7
    %v43 = vsub.s32 0, %v42
    %v44 = vrot.slane %v39, %v43
    %v46 = vmul.f32 %v38, %v44
    %v47 = vld [vmem:[%s2] sm:$0x1]
    %v49 = vlaneseq
    %v50 = vshrl.u32 %v49, 7
    %v51 = vsub.s32 0, %v50
    %v52 = vrot.slane %v47, %v51
    %v54 = vadd.f32 %v46, %v52
    %v55 = vmul.f32 %v54, %v54
    %v56 = vsel %vm16, %v55, 0.0
    %57 = vadd.xlane.f32.xlu0 %v56
    %v58 = vpop.xlane.xlu0 %57
    %v59 = vrsqrt.pop %v58
    %v60 = vmul.f32 %v54, %v59
    %61 = vst.msk [vmem:[#allocation2] sm:$0x3] %vm16, %v60
    // Predicated region
    $region14: #{embedding_net_l2.7} parent=1 // pred_check
      _
    $region15: #{embedding_net_l2.7} parent=1 // pred_check_branch
      %63 = sbr.rel (0) target = $region17
    $region16: #{embedding_net_l2.7} parent=1 // pred_region
      %s65 = ssub.s32 32, 32
      %66 = vsyncadd [#allocation3], %s65
      %s68 = sshll.u32 [#allocation2], 4
      %s69 = int_to_ptr.vmem [resolvable:$true] %s68
      %71 = dma.vmem_to_hbm [thread:$0]  %s69, 32, %s3, [#allocation3]
    $region17: #{embedding_net_l2.7} parent=1 // pred_fallthru
      _
    // Predicated region
    $region18: #{embedding_net_l2.7} parent=1 // pred_check
      _
    $region19: #{embedding_net_l2.7} parent=1 // pred_check_branch
      %73 = sbr.rel (0) target = $region21
    $region20: #{embedding_net_l2.7} parent=1 // pred_region
      %74 = dma.done [#allocation3], 32
    $region21: #{embedding_net_l2.7} parent=1 // pred_fallthru
      _
    %75 = vsyncpa [#allocation3], 1

</llo_original>
